<compile_context>
chip_gen: v7x
topology: tpu7x:2x2x1
jax: 0.10.0
libtpu: 0.0.40
codegen_flags: <defaults>
</compile_context>

<pallas_src>
import numpy as np

import jax
import jax.numpy as jnp
from jax import lax
from jax.experimental import pallas as pl
from jax.experimental.pallas import tpu as pltpu

# ----------------------------- problem sizes -------------------------------
BQ, B = 2, 1            # query batch, explained-image batch (B=1, required by the
                        # torch.matmul broadcast in the original module)
C, H, W = 4, 16, 16     # image channels / spatial
K = 8                   # target-layer activation channels
HP, WP = H // 2, W // 2 # activation spatial size (after 2x2 pool)
D = 32                  # embedding dim
HW = H * W
PHW = HP * WP
NIMG = BQ + B           # images pushed through the backbone up-front (x_q then x)


# ------------------------------ fused kernel --------------------------------
def sim_score_cam_kernel(xin_ref, bigx_ref, mpT_ref, muT_ref, bwc_ref, sel_ref,
                         wfr_ref, mgap_ref, wf_ref, bf_ref, score_ref):
    """Single-invocation fused SimScoreCAM forward.

    xin_ref   : (NIMG*C, HW)     flattened channel maps of [x_q ; x]
    bigx_ref  : (HW, C*HW)       block-diag replicated x (masking operator)
    mpT_ref   : (HW, PHW)        kron(P, P)^T       (2x2 avg-pool)
    muT_ref   : (PHW, HW)        kron(U, U)^T       (bilinear upsample)
    bwc_ref   : (NIMG*K, NIMG*C) kron(I_NIMG, Wc)   (batched 1x1 conv)
    sel_ref   : (NIMG, NIMG*K)   kron(I_NIMG, 1_K)  (per-image GAP gather)
    wfr_ref   : (NIMG*K, D)      tile(Wf, NIMG)
    mgap_ref  : (C*HW, K)        folded pool -> conv -> GAP of the masked path
    wf_ref    : (K, D)
    bf_ref    : (1, D)
    score_ref : (BQ, HW)         (out) score saliency map, lane-dense
    """
    def dot(a, b):
        return jnp.dot(a, b, preferred_element_type=jnp.float32)

    def dot_t(a, b):  # a @ b.T on the MXU without an explicit transpose
        return lax.dot_general(a, b, (((1,), (1,)), ((), ())),
                               preferred_element_type=jnp.float32)

    bf = bf_ref[...]

    # ---- backbone on [x_q ; x]: pool -> 1x1 conv -> GAP -> embed (all MXU) ----
    pooled = dot(xin_ref[...], mpT_ref[...])                     # (NIMG*C, PHW)
    acts = dot(bwc_ref[...], pooled)                             # (NIMG*K, PHW)
    gap = jnp.sum(acts, axis=1, keepdims=True) * (1.0 / PHW)     # (NIMG*K, 1)
    feats = dot(sel_ref[...], gap * wfr_ref[...]) + bf           # (NIMG, D)
    q_feat = feats[:BQ]                                          # (BQ, D)
    r_feat = feats[BQ:BQ + 1]                                    # (1, D)
    a_x = acts[BQ * K:(BQ + 1) * K]                              # (K, PHW) target layer of x

    # ---- bilinear upsample (align_corners=False) + 1-minmax per channel ----
    act_up = dot(a_x, muT_ref[...])                              # (K, HW) lane-dense
    amin = jnp.min(act_up, axis=1, keepdims=True)
    amax = jnp.max(act_up, axis=1, keepdims=True)
    # TODO(synk): the PyTorch module drops channels with amin == amax via a
    # data-dependent (dynamic-shape) gather; here we guard the division and
    # keep all channels instead (identical when every channel varies).
    inv_den = 1.0 / jnp.where(amax > amin, amax - amin, 1.0)     # (K, 1)
    norm = 1.0 - (act_up - amin) * inv_den                       # (K, HW)

    # ---- masked_inputs[k,c] = norm[k] @ x[c]  -> single MXU matmul ----
    masked = dot(norm, bigx_ref[...])                            # (K, C*HW)

    # ---- backbone on the K masked inputs (pool/conv/GAP folded into mgap) ----
    gap_m = dot(masked, mgap_ref[...])                           # (K, K)
    m_feat = dot(gap_m, wf_ref[...]) + bf                        # (K, D)

    # ---- cdist (Gram identity on MXU), clamp, global min-max, weighted mean ----
    o_dist = jnp.sqrt(jnp.sum((q_feat - r_feat) ** 2, axis=1, keepdims=True))  # (BQ,1)
    qq = jnp.sum(q_feat * q_feat, axis=1, keepdims=True)         # (BQ, 1)
    mm_row = dot_t(jnp.ones((1, D), jnp.float32), m_feat * m_feat)  # (1, K)
    cross = dot_t(q_feat, m_feat)                                # (BQ, K)
    d2 = jnp.maximum(qq + mm_row - 2.0 * cross, 0.0)             # (BQ, K)
    m_dist = jnp.maximum(jnp.sqrt(d2) - o_dist, 0.0)             # (BQ, K)
    mn = jnp.min(m_dist)
    mx = jnp.max(m_dist)
    m_dist = (m_dist - mn) * (1.0 / jnp.where(mx > mn, mx - mn, 1.0))

    score_ref[...] = dot(m_dist * (1.0 / K), act_up)             # (BQ, HW) lane-dense


# ------------------------------ wrapper (glue) -------------------------------
def sim_score_cam(x_q, x, P, U, Wc, Wf, bf):
    f32 = jnp.float32
    eye_n = jnp.eye(NIMG, dtype=f32)

    # Precomputed weight-only operator matrices (layout plumbing / constant
    # folding; built once outside the kernel).
    MpT = jnp.kron(P, P).T                                           # (HW, PHW)
    MuT = jnp.kron(U, U).T                                           # (PHW, HW)
    bwc = jnp.kron(eye_n, Wc)                                        # (NIMG*K, NIMG*C)
    sel = jnp.kron(eye_n, jnp.ones((1, K), f32))                     # (NIMG, NIMG*K)
    wfr = jnp.tile(Wf, (NIMG, 1))                                    # (NIMG*K, D)
    # pool -> 1x1 conv -> GAP of the masked path folded into ONE operator via
    # the kron mixed-product: kron(I_C, MpT) @ kron(Wc^T, 1/PHW)
    mgap = jnp.kron(Wc.T, jnp.dot(MpT, jnp.ones((PHW, 1), f32)) / PHW)  # (C*HW, K)

    # Data in kernel-friendly layouts (flattened spatial; block-diag x for masking).
    xin = jnp.concatenate(
        [x_q.reshape(BQ * C, HW), x.reshape(B * C, HW)], axis=0)     # (NIMG*C, HW)
    # bigx[i*W+m, c*HW+p*W+j] = delta(i,p) * x[0,c,m,j]  -> norm @ bigx == masked inputs
    bigx = jnp.einsum('ip,cmj->imcpj', jnp.eye(H, dtype=f32),
                      x[0]).reshape(HW, C * HW)                      # (HW, C*HW)

    operands = (xin, bigx, MpT, MuT, bwc, sel, wfr, mgap, Wf, bf)

    score = pl.pallas_call(
        sim_score_cam_kernel,
        out_shape=jax.ShapeDtypeStruct((BQ, HW), f32),
        grid=(1,),
        in_specs=[pl.BlockSpec(a.shape, lambda i: (0, 0)) for a in operands],
        out_specs=pl.BlockSpec((BQ, HW), lambda i: (0, 0)),
        compiler_params=pltpu.CompilerParams(dimension_semantics=("arbitrary",)),
    )(*operands)
    return score.reshape(BQ, H, W)


# ----------------------- deterministic params / helpers ---------------------
def avgpool_matrix(n_in):
    n_out = n_in // 2
    P = np.zeros((n_out, n_in), np.float32)
    for i in range(n_out):
        P[i, 2 * i] = 0.5
        P[i, 2 * i + 1] = 0.5
    return jnp.asarray(P)


def bilinear_matrix(n_out, n_in):
    # Replicates torch.nn.functional.interpolate(mode='bilinear',
    # align_corners=False) as a separable 1-D interpolation matrix.
    U = np.zeros((n_out, n_in), np.float32)
    scale = n_in / n_out
    for i in range(n_out):
        src = max((i + 0.5) * scale - 0.5, 0.0)
        i0 = min(int(np.floor(src)), n_in - 1)
        i1 = min(i0 + 1, n_in - 1)
        lam = src - i0
        U[i, i0] += 1.0 - lam
        U[i, i1] += lam
    return jnp.asarray(U)


# ----------------------------- pure-JAX reference ---------------------------
def _model_ref(x, P, Wc, Wf, bf):
    xp = jnp.einsum('ih,nchw,jw->ncij', P, x, P)
    A = jnp.einsum('kc,ncij->nkij', Wc, xp)
    feat = A.mean(axis=(2, 3)) @ Wf + bf
    return A, feat


def sim_score_cam_ref(x_q, x, P, U, Wc, Wf, bf):
    _, q_feat = _model_ref(x_q, P, Wc, Wf, bf)
    A, r_feat = _model_ref(x, P, Wc, Wf, bf)
    o_dist = jnp.sqrt(jnp.sum((q_feat[:, None, :] - r_feat[None, :, :]) ** 2, -1))
    act = jnp.einsum('Ih,nkhw,Jw->nkIJ', U, A, U)
    amin = act.min(axis=(2, 3), keepdims=True)
    amax = act.max(axis=(2, 3), keepdims=True)
    norm = 1.0 - (act - amin) / (amax - amin)
    masked = jnp.einsum('kij,cjl->kcil', norm[0], x[0])
    _, m_feat = _model_ref(masked, P, Wc, Wf, bf)
    m_dist = jnp.sqrt(jnp.sum((q_feat[:, None, :] - m_feat[None, :, :]) ** 2, -1))
    m_dist = jnp.maximum(m_dist - o_dist, 0.0)
    m_dist = (m_dist - m_dist.min()) / (m_dist.max() - m_dist.min())
    return jnp.mean(m_dist[..., None, None] * act, axis=1)


# ----------------------------------- main -----------------------------------
if __name__ == "__main__":
    key = jax.random.PRNGKey(0)
    k1, k2, k3, k4, k5 = jax.random.split(key, 5)
    x_q = jax.random.normal(k1, (BQ, C, H, W), jnp.float32)
    x = jax.random.normal(k2, (B, C, H, W), jnp.float32)
    Wc = jax.random.normal(k3, (K, C), jnp.float32) / np.sqrt(C)
    Wf = jax.random.normal(k4, (K, D), jnp.float32) / np.sqrt(K)
    bf = 0.1 * jax.random.normal(k5, (1, D), jnp.float32)

    P = avgpool_matrix(H)           # (HP, H)
    U = bilinear_matrix(H, HP)      # (H, HP)

    score = sim_score_cam(x_q, x, P, U, Wc, Wf, bf)
    score = jax.block_until_ready(score)

    ref = sim_score_cam_ref(x_q, x, P, U, Wc, Wf, bf)
    assert score.shape == (BQ, H, W), score.shape
    assert bool(jnp.all(jnp.isfinite(score)))
    assert bool(jnp.allclose(score, ref, rtol=2e-3, atol=2e-3)), \
        float(jnp.max(jnp.abs(score - ref)))

    print("KERNEL_OK")
</pallas_src>

<mosaic_0001>
module attributes {stable_mosaic.version = 11 : i64} {
  func.func @sim_score_cam_kernel(%arg0: i32, %arg1: memref<12x256xf32, #tpu.memory_space<vmem>>, %arg2: memref<256x1024xf32, #tpu.memory_space<vmem>>, %arg3: memref<256x64xf32, #tpu.memory_space<vmem>>, %arg4: memref<64x256xf32, #tpu.memory_space<vmem>>, %arg5: memref<24x12xf32, #tpu.memory_space<vmem>>, %arg6: memref<3x24xf32, #tpu.memory_space<vmem>>, %arg7: memref<24x32xf32, #tpu.memory_space<vmem>>, %arg8: memref<1024x8xf32, #tpu.memory_space<vmem>>, %arg9: memref<8x32xf32, #tpu.memory_space<vmem>>, %arg10: memref<1x32xf32, #tpu.memory_space<vmem>>, %arg11: memref<2x256xf32, #tpu.memory_space<vmem>>) attributes {dimension_semantics = [#tpu.dimension_semantics<arbitrary>], iteration_bounds = array<i64: 1>, scalar_prefetch = 0 : i64, scratch_operands = 0 : i64, tpu.core_type = #tpu.core_type<tc>, window_params = [{pipeline_mode = #tpu.pipeline_mode<synchronous>, transform_indices = @transform_0, window_bounds = array<i64: 12, 256>}, {pipeline_mode = #tpu.pipeline_mode<synchronous>, transform_indices = @transform_1, window_bounds = array<i64: 256, 1024>}, {pipeline_mode = #tpu.pipeline_mode<synchronous>, transform_indices = @transform_2, window_bounds = array<i64: 256, 64>}, {pipeline_mode = #tpu.pipeline_mode<synchronous>, transform_indices = @transform_3, window_bounds = array<i64: 64, 256>}, {pipeline_mode = #tpu.pipeline_mode<synchronous>, transform_indices = @transform_4, window_bounds = array<i64: 24, 12>}, {pipeline_mode = #tpu.pipeline_mode<synchronous>, transform_indices = @transform_5, window_bounds = array<i64: 3, 24>}, {pipeline_mode = #tpu.pipeline_mode<synchronous>, transform_indices = @transform_6, window_bounds = array<i64: 24, 32>}, {pipeline_mode = #tpu.pipeline_mode<synchronous>, transform_indices = @transform_7, window_bounds = array<i64: 1024, 8>}, {pipeline_mode = #tpu.pipeline_mode<synchronous>, transform_indices = @transform_8, window_bounds = array<i64: 8, 32>}, {pipeline_mode = #tpu.pipeline_mode<synchronous>, transform_indices = @transform_9, window_bounds = array<i64: 1, 32>}, {pipeline_mode = #tpu.pipeline_mode<synchronous>, transform_indices = @transform_10, window_bounds = array<i64: 2, 256>}]} {
    %c0 = arith.constant 0 : index
    %c0_0 = arith.constant 0 : index
    %0 = vector.load %arg10[%c0, %c0_0] : memref<1x32xf32, #tpu.memory_space<vmem>>, vector<1x32xf32>
    %c0_1 = arith.constant 0 : index
    %c0_2 = arith.constant 0 : index
    %1 = vector.load %arg1[%c0_1, %c0_2] : memref<12x256xf32, #tpu.memory_space<vmem>>, vector<12x256xf32>
    %c0_3 = arith.constant 0 : index
    %c0_4 = arith.constant 0 : index
    %2 = vector.load %arg3[%c0_3, %c0_4] : memref<256x64xf32, #tpu.memory_space<vmem>>, vector<256x64xf32>
    %cst = arith.constant dense<0.000000e+00> : vector<12x64xf32>
    %3 = tpu.matmul %1, %2, %cst {dimension_numbers = #tpu.dot_dimension_numbers<[1], [0], [0], [1], [0, 0, 1, 1], [], []>} : vector<12x256xf32>, vector<256x64xf32>, vector<12x64xf32> -> vector<12x64xf32>
    %c0_5 = arith.constant 0 : index
    %c0_6 = arith.constant 0 : index
    %4 = vector.load %arg5[%c0_5, %c0_6] : memref<24x12xf32, #tpu.memory_space<vmem>>, vector<24x12xf32>
    %cst_7 = arith.constant dense<0.000000e+00> : vector<24x64xf32>
    %5 = tpu.matmul %4, %3, %cst_7 {dimension_numbers = #tpu.dot_dimension_numbers<[1], [0], [0], [1], [0, 0, 1, 1], [], []>} : vector<24x12xf32>, vector<12x64xf32>, vector<24x64xf32> -> vector<24x64xf32>
    %cst_8 = arith.constant dense<0.000000e+00> : vector<24xf32>
    %6 = vector.multi_reduction <add>, %5, %cst_8 [1] : vector<24x64xf32> to vector<24xf32>
    %7 = vector.shape_cast %6 : vector<24xf32> to vector<24x1xf32>
    %cst_9 = arith.constant 1.562500e-02 : f32
    %8 = vector.broadcast %cst_9 : f32 to vector<24x1xf32>
    %9 = arith.mulf %7, %8 : vector<24x1xf32>
    %c0_10 = arith.constant 0 : index
    %c0_11 = arith.constant 0 : index
    %10 = vector.load %arg6[%c0_10, %c0_11] : memref<3x24xf32, #tpu.memory_space<vmem>>, vector<3x24xf32>
    %c0_12 = arith.constant 0 : index
    %c0_13 = arith.constant 0 : index
    %11 = vector.load %arg7[%c0_12, %c0_13] : memref<24x32xf32, #tpu.memory_space<vmem>>, vector<24x32xf32>
    %12 = vector.broadcast %9 : vector<24x1xf32> to vector<24x32xf32>
    %13 = arith.mulf %12, %11 : vector<24x32xf32>
    %cst_14 = arith.constant dense<0.000000e+00> : vector<3x32xf32>
    %14 = tpu.matmul %10, %13, %cst_14 {dimension_numbers = #tpu.dot_dimension_numbers<[1], [0], [0], [1], [0, 0, 1, 1], [], []>} : vector<3x24xf32>, vector<24x32xf32>, vector<3x32xf32> -> vector<3x32xf32>
    %15 = vector.broadcast %0 : vector<1x32xf32> to vector<3x32xf32>
    %16 = arith.addf %14, %15 : vector<3x32xf32>
    %17 = vector.extract_strided_slice %16 {offsets = [0, 0], sizes = [2, 32], strides = [1, 1]} : vector<3x32xf32> to vector<2x32xf32>
    %18 = vector.extract_strided_slice %16 {offsets = [2, 0], sizes = [1, 32], strides = [1, 1]} : vector<3x32xf32> to vector<1x32xf32>
    %19 = vector.extract_strided_slice %5 {offsets = [16, 0], sizes = [8, 64], strides = [1, 1]} : vector<24x64xf32> to vector<8x64xf32>
    %c0_15 = arith.constant 0 : index
    %c0_16 = arith.constant 0 : index
    %20 = vector.load %arg4[%c0_15, %c0_16] : memref<64x256xf32, #tpu.memory_space<vmem>>, vector<64x256xf32>
    %cst_17 = arith.constant dense<0.000000e+00> : vector<8x256xf32>
    %21 = tpu.matmul %19, %20, %cst_17 {dimension_numbers = #tpu.dot_dimension_numbers<[1], [0], [0], [1], [0, 0, 1, 1], [], []>} : vector<8x64xf32>, vector<64x256xf32>, vector<8x256xf32> -> vector<8x256xf32>
    %cst_18 = arith.constant dense<0x7F800000> : vector<8xf32>
    %22 = vector.multi_reduction <minimumf>, %21, %cst_18 [1] : vector<8x256xf32> to vector<8xf32>
    %23 = vector.shape_cast %22 : vector<8xf32> to vector<8x1xf32>
    %cst_19 = arith.constant dense<0xFF800000> : vector<8xf32>
    %24 = vector.multi_reduction <maximumf>, %21, %cst_19 [1] : vector<8x256xf32> to vector<8xf32>
    %25 = vector.shape_cast %24 : vector<8xf32> to vector<8x1xf32>
    %26 = arith.cmpf ogt, %25, %23 : vector<8x1xf32>
    %27 = arith.subf %25, %23 : vector<8x1xf32>
    %cst_20 = arith.constant 1.000000e+00 : f32
    %28 = vector.broadcast %cst_20 : f32 to vector<8x1xf32>
    %29 = arith.select %26, %27, %28 : vector<8x1xi1>, vector<8x1xf32>
    %cst_21 = arith.constant 1.000000e+00 : f32
    %30 = vector.broadcast %cst_21 : f32 to vector<8x1xf32>
    %31 = arith.divf %30, %29 : vector<8x1xf32>
    %32 = vector.broadcast %23 : vector<8x1xf32> to vector<8x256xf32>
    %33 = arith.subf %21, %32 : vector<8x256xf32>
    %34 = vector.broadcast %31 : vector<8x1xf32> to vector<8x256xf32>
    %35 = arith.mulf %33, %34 : vector<8x256xf32>
    %cst_22 = arith.constant 1.000000e+00 : f32
    %36 = vector.broadcast %cst_22 : f32 to vector<8x256xf32>
    %37 = arith.subf %36, %35 : vector<8x256xf32>
    %c0_23 = arith.constant 0 : index
    %c0_24 = arith.constant 0 : index
    %38 = vector.load %arg2[%c0_23, %c0_24] : memref<256x1024xf32, #tpu.memory_space<vmem>>, vector<256x1024xf32>
    %cst_25 = arith.constant dense<0.000000e+00> : vector<8x1024xf32>
    %39 = tpu.matmul %37, %38, %cst_25 {dimension_numbers = #tpu.dot_dimension_numbers<[1], [0], [0], [1], [0, 0, 1, 1], [], []>} : vector<8x256xf32>, vector<256x1024xf32>, vector<8x1024xf32> -> vector<8x1024xf32>
    %c0_26 = arith.constant 0 : index
    %c0_27 = arith.constant 0 : index
    %40 = vector.load %arg8[%c0_26, %c0_27] : memref<1024x8xf32, #tpu.memory_space<vmem>>, vector<1024x8xf32>
    %cst_28 = arith.constant dense<0.000000e+00> : vector<8x8xf32>
    %41 = tpu.matmul %39, %40, %cst_28 {dimension_numbers = #tpu.dot_dimension_numbers<[1], [0], [0], [1], [0, 0, 1, 1], [], []>} : vector<8x1024xf32>, vector<1024x8xf32>, vector<8x8xf32> -> vector<8x8xf32>
    %c0_29 = arith.constant 0 : index
    %c0_30 = arith.constant 0 : index
    %42 = vector.load %arg9[%c0_29, %c0_30] : memref<8x32xf32, #tpu.memory_space<vmem>>, vector<8x32xf32>
    %cst_31 = arith.constant dense<0.000000e+00> : vector<8x32xf32>
    %43 = tpu.matmul %41, %42, %cst_31 {dimension_numbers = #tpu.dot_dimension_numbers<[1], [0], [0], [1], [0, 0, 1, 1], [], []>} : vector<8x8xf32>, vector<8x32xf32>, vector<8x32xf32> -> vector<8x32xf32>
    %44 = vector.broadcast %0 : vector<1x32xf32> to vector<8x32xf32>
    %45 = arith.addf %43, %44 : vector<8x32xf32>
    %46 = vector.broadcast %18 : vector<1x32xf32> to vector<2x32xf32>
    %47 = arith.subf %17, %46 : vector<2x32xf32>
    %48 = arith.mulf %47, %47 : vector<2x32xf32>
    %cst_32 = arith.constant dense<0.000000e+00> : vector<2xf32>
    %49 = vector.multi_reduction <add>, %48, %cst_32 [1] : vector<2x32xf32> to vector<2xf32>
    %50 = vector.shape_cast %49 : vector<2xf32> to vector<2x1xf32>
    %51 = math.sqrt %50 : vector<2x1xf32>
    %52 = arith.mulf %17, %17 : vector<2x32xf32>
    %cst_33 = arith.constant dense<0.000000e+00> : vector<2xf32>
    %53 = vector.multi_reduction <add>, %52, %cst_33 [1] : vector<2x32xf32> to vector<2xf32>
    %54 = vector.shape_cast %53 : vector<2xf32> to vector<2x1xf32>
    %cst_34 = arith.constant 1.000000e+00 : f32
    %55 = vector.broadcast %cst_34 : f32 to vector<1x32xf32>
    %56 = arith.mulf %45, %45 : vector<8x32xf32>
    %cst_35 = arith.constant dense<0.000000e+00> : vector<1x8xf32>
    %57 = tpu.matmul %55, %56, %cst_35 {dimension_numbers = #tpu.dot_dimension_numbers<[1], [1], [0], [0], [0, 0, 1, 0], [], []>} : vector<1x32xf32>, vector<8x32xf32>, vector<1x8xf32> -> vector<1x8xf32>
    %cst_36 = arith.constant dense<0.000000e+00> : vector<2x8xf32>
    %58 = tpu.matmul %17, %45, %cst_36 {dimension_numbers = #tpu.dot_dimension_numbers<[1], [1], [0], [0], [0, 0, 1, 0], [], []>} : vector<2x32xf32>, vector<8x32xf32>, vector<2x8xf32> -> vector<2x8xf32>
    %59 = vector.broadcast %54 : vector<2x1xf32> to vector<2x8xf32>
    %60 = vector.broadcast %57 : vector<1x8xf32> to vector<2x8xf32>
    %61 = arith.addf %59, %60 : vector<2x8xf32>
    %cst_37 = arith.constant 2.000000e+00 : f32
    %62 = vector.broadcast %cst_37 : f32 to vector<2x8xf32>
    %63 = arith.mulf %62, %58 : vector<2x8xf32>
    %64 = arith.subf %61, %63 : vector<2x8xf32>
    %cst_38 = arith.constant 0.000000e+00 : f32
    %65 = vector.broadcast %cst_38 : f32 to vector<2x8xf32>
    %66 = arith.maximumf %64, %65 : vector<2x8xf32>
    %67 = math.sqrt %66 : vector<2x8xf32>
    %68 = vector.broadcast %51 : vector<2x1xf32> to vector<2x8xf32>
    %69 = arith.subf %67, %68 : vector<2x8xf32>
    %cst_39 = arith.constant 0.000000e+00 : f32
    %70 = vector.broadcast %cst_39 : f32 to vector<2x8xf32>
    %71 = arith.maximumf %69, %70 : vector<2x8xf32>
    %72 = vector.shape_cast %71 : vector<2x8xf32> to vector<1x2x8xf32>
    %cst_40 = arith.constant dense<0x7F800000> : vector<1xf32>
    %73 = vector.multi_reduction <minimumf>, %72, %cst_40 [1, 2] : vector<1x2x8xf32> to vector<1xf32>
    %74 = vector.shape_cast %73 : vector<1xf32> to vector<1x1x1xf32>
    %75 = vector.extract %74[0, 0, 0] : f32 from vector<1x1x1xf32>
    %76 = vector.shape_cast %71 : vector<2x8xf32> to vector<1x2x8xf32>
    %cst_41 = arith.constant dense<0xFF800000> : vector<1xf32>
    %77 = vector.multi_reduction <maximumf>, %76, %cst_41 [1, 2] : vector<1x2x8xf32> to vector<1xf32>
    %78 = vector.shape_cast %77 : vector<1xf32> to vector<1x1x1xf32>
    %79 = vector.extract %78[0, 0, 0] : f32 from vector<1x1x1xf32>
    %80 = vector.broadcast %75 : f32 to vector<2x8xf32>
    %81 = arith.subf %71, %80 : vector<2x8xf32>
    %82 = arith.cmpf ogt, %79, %75 : f32
    %83 = arith.subf %79, %75 : f32
    %cst_42 = arith.constant 1.000000e+00 : f32
    %84 = arith.select %82, %83, %cst_42 : f32
    %cst_43 = arith.constant 1.000000e+00 : f32
    %85 = arith.divf %cst_43, %84 : f32
    %86 = vector.broadcast %85 : f32 to vector<2x8xf32>
    %87 = arith.mulf %81, %86 : vector<2x8xf32>
    %cst_44 = arith.constant 1.250000e-01 : f32
    %88 = vector.broadcast %cst_44 : f32 to vector<2x8xf32>
    %89 = arith.mulf %87, %88 : vector<2x8xf32>
    %cst_45 = arith.constant dense<0.000000e+00> : vector<2x256xf32>
    %90 = tpu.matmul %89, %21, %cst_45 {dimension_numbers = #tpu.dot_dimension_numbers<[1], [0], [0], [1], [0, 0, 1, 1], [], []>} : vector<2x8xf32>, vector<8x256xf32>, vector<2x256xf32> -> vector<2x256xf32>
    %c0_46 = arith.constant 0 : index
    %c0_47 = arith.constant 0 : index
    %91 = vector.load %arg11[%c0_46, %c0_47] : memref<2x256xf32, #tpu.memory_space<vmem>>, vector<2x256xf32>
    tpu.vector_store %arg11[%c0_46, %c0_47], %90 {strides = array<i32>} : memref<2x256xf32, #tpu.memory_space<vmem>>, vector<2x256xf32>,
    return
  }
  func.func @transform_0(%arg0: i32) -> (i32, i32) {
    %c0_i32 = arith.constant 0 : i32
    %c0_i32_0 = arith.constant 0 : i32
    %c0_i32_1 = arith.constant 0 : i32
    return %c0_i32, %c0_i32_0 : i32, i32
  }
  func.func @transform_1(%arg0: i32) -> (i32, i32) {
    %c0_i32 = arith.constant 0 : i32
    %c0_i32_0 = arith.constant 0 : i32
    %c0_i32_1 = arith.constant 0 : i32
    return %c0_i32, %c0_i32_0 : i32, i32
  }
  func.func @transform_2(%arg0: i32) -> (i32, i32) {
    %c0_i32 = arith.constant 0 : i32
    %c0_i32_0 = arith.constant 0 : i32
    %c0_i32_1 = arith.constant 0 : i32
    return %c0_i32, %c0_i32_0 : i32, i32
  }
  func.func @transform_3(%arg0: i32) -> (i32, i32) {
    %c0_i32 = arith.constant 0 : i32
    %c0_i32_0 = arith.constant 0 : i32
    %c0_i32_1 = arith.constant 0 : i32
    return %c0_i32, %c0_i32_0 : i32, i32
  }
  func.func @transform_4(%arg0: i32) -> (i32, i32) {
    %c0_i32 = arith.constant 0 : i32
    %c0_i32_0 = arith.constant 0 : i32
    %c0_i32_1 = arith.constant 0 : i32
    return %c0_i32, %c0_i32_0 : i32, i32
  }
  func.func @transform_5(%arg0: i32) -> (i32, i32) {
    %c0_i32 = arith.constant 0 : i32
    %c0_i32_0 = arith.constant 0 : i32
    %c0_i32_1 = arith.constant 0 : i32
    return %c0_i32, %c0_i32_0 : i32, i32
  }
  func.func @transform_6(%arg0: i32) -> (i32, i32) {
    %c0_i32 = arith.constant 0 : i32
    %c0_i32_0 = arith.constant 0 : i32
    %c0_i32_1 = arith.constant 0 : i32
    return %c0_i32, %c0_i32_0 : i32, i32
  }
  func.func @transform_7(%arg0: i32) -> (i32, i32) {
    %c0_i32 = arith.constant 0 : i32
    %c0_i32_0 = arith.constant 0 : i32
    %c0_i32_1 = arith.constant 0 : i32
    return %c0_i32, %c0_i32_0 : i32, i32
  }
  func.func @transform_8(%arg0: i32) -> (i32, i32) {
    %c0_i32 = arith.constant 0 : i32
    %c0_i32_0 = arith.constant 0 : i32
    %c0_i32_1 = arith.constant 0 : i32
    return %c0_i32, %c0_i32_0 : i32, i32
  }
  func.func @transform_9(%arg0: i32) -> (i32, i32) {
    %c0_i32 = arith.constant 0 : i32
    %c0_i32_0 = arith.constant 0 : i32
    %c0_i32_1 = arith.constant 0 : i32
    return %c0_i32, %c0_i32_0 : i32, i32
  }
  func.func @transform_10(%arg0: i32) -> (i32, i32) {
    %c0_i32 = arith.constant 0 : i32
    %c0_i32_0 = arith.constant 0 : i32
    %c0_i32_1 = arith.constant 0 : i32
    return %c0_i32, %c0_i32_0 : i32, i32
  }
}

</mosaic_0001>

<llo_original>
// kernel: tpu_custom_call.1
$region0: #{tpu_custom_call.1}
  #allocation0 [shape = 'u32[]', space=smem, size = 0x4, offset = 0x4, fixed_abs, tag = 'smem constant byte address 0x4 - core index']
  #allocation1 [shape = 'u32[144,128]{1,0:T(1,128)}', space=vmem, size = 0x12000, scoped, tag = 'internal scratch']
  %s0 = inlined_call_operand.vmem [shape: f32[12,256], index: 0, kind: input, shape index: {}]
  %s1 = inlined_call_operand.hbm [shape: f32[256,1024], index: 1, kind: input, shape index: {}]
  %s2 = inlined_call_operand.vmem [shape: f32[256,64], index: 2, kind: input, shape index: {}]
  %s3 = inlined_call_operand.vmem [shape: f32[64,256], index: 3, kind: input, shape index: {}]
  %s4 = inlined_call_operand.vmem [shape: f32[24,12], index: 4, kind: input, shape index: {}]
  %s5 = inlined_call_operand.vmem [shape: f32[3,24], index: 5, kind: input, shape index: {}]
  %s6 = inlined_call_operand.vmem [shape: f32[24,32], index: 6, kind: input, shape index: {}]
  %s7 = inlined_call_operand.vmem [shape: f32[1024,8], index: 7, kind: input, shape index: {}]
  %s8 = inlined_call_operand.vmem [shape: f32[8,32], index: 8, kind: input, shape index: {}]
  %s9 = inlined_call_operand.vmem [shape: f32[1,32], index: 9, kind: input, shape index: {}]
  %s10 = inlined_call_operand.hbm [shape: f32[2,256], index: 10, kind: output, shape index: {}]
  %s11 = sld [smem:[#allocation0]]
  $region54: #{tpu_custom_call.1} parent=0
    _
  %s13 = ssub.s32 1, %s11
  %s14 = scalar_select 0, %s13, %s11
  $region1: #{tpu_custom_call.1} parent=0
    #allocation2 [shape = 'u8[1048576]{0}', space=vmem, size = 0x100000, scoped, tag = 'input window, operand 1, single buffered']
    #allocation3 [shape = 's32[1]{0}', space=sflag, size = 0x4, scoped, tag = 'scoped memory for tpu_custom_call.1']
    #allocation4 [shape = 's32[1]{0}', space=sflag, size = 0x4, scoped, tag = 'scoped memory for tpu_custom_call.1']
    #allocation5 [shape = 'u8[2048]{0}', space=vmem, size = 0x800, scoped, tag = 'output window, operand 0, single buffered']
    %15 = vsyncpa [#allocation3], 0
    %16 = vsyncpa [#allocation4], 0
    // Predicated region
    $region2: #{tpu_custom_call.1} parent=1 // pred_check
      _
    $region3: #{tpu_custom_call.1} parent=1 // pred_check_branch
      %18 = sbr.rel (0) target = $region5
    $region4: #{tpu_custom_call.1} parent=1 // pred_region
      _
    $region5: #{tpu_custom_call.1} parent=1 // pred_fallthru
      _
    // Predicated region
    $region6: #{tpu_custom_call.1} parent=1 // pred_check
      _
    $region7: #{tpu_custom_call.1} parent=1 // pred_check_branch
      %20 = sbr.rel (0) target = $region9
    $region8: #{tpu_custom_call.1} parent=1 // pred_region
      %s22 = ssub.s32 32768, 32768
      %23 = vsyncadd [#allocation3], %s22
      %s24 = sshll.u32 [#allocation2], 4
      %s25 = int_to_ptr.vmem [resolvable:$true] %s24
      %30 = dma.hbm_to_vmem [thread:$0]  %s1, 32768, %s25, [#allocation3], 1024, 1024, 64
    $region9: #{tpu_custom_call.1} parent=1 // pred_fallthru
      _
    // Predicated region
    $region10: #{tpu_custom_call.1} parent=1 // pred_check
      _
    $region11: #{tpu_custom_call.1} parent=1 // pred_check_branch
      %32 = sbr.rel (0) target = $region13
    $region12: #{tpu_custom_call.1} parent=1 // pred_region
      _
    $region13: #{tpu_custom_call.1} parent=1 // pred_fallthru
      _
    // Predicated region
    $region14: #{tpu_custom_call.1} parent=1 // pred_check
      _
    $region15: #{tpu_custom_call.1} parent=1 // pred_check_branch
      %34 = sbr.rel (0) target = $region17
    $region16: #{tpu_custom_call.1} parent=1 // pred_region
      _
    $region17: #{tpu_custom_call.1} parent=1 // pred_fallthru
      _
    // Predicated region
    $region18: #{tpu_custom_call.1} parent=1 // pred_check
      _
    $region19: #{tpu_custom_call.1} parent=1 // pred_check_branch
      %36 = sbr.rel (0) target = $region21
    $region20: #{tpu_custom_call.1} parent=1 // pred_region
      _
    $region21: #{tpu_custom_call.1} parent=1 // pred_fallthru
      _
    // Predicated region
    $region22: #{tpu_custom_call.1} parent=1 // pred_check
      _
    $region23: #{tpu_custom_call.1} parent=1 // pred_check_branch
      %38 = sbr.rel (0) target = $region25
    $region24: #{tpu_custom_call.1} parent=1 // pred_region
      _
    $region25: #{tpu_custom_call.1} parent=1 // pred_fallthru
      _
    // Predicated region
    $region26: #{tpu_custom_call.1} parent=1 // pred_check
      _
    $region27: #{tpu_custom_call.1} parent=1 // pred_check_branch
      %40 = sbr.rel (0) target = $region29
    $region28: #{tpu_custom_call.1} parent=1 // pred_region
      _
    $region29: #{tpu_custom_call.1} parent=1 // pred_fallthru
      _
    // Predicated region
    $region30: #{tpu_custom_call.1} parent=1 // pred_check
      _
    $region31: #{tpu_custom_call.1} parent=1 // pred_check_branch
      %42 = sbr.rel (0) target = $region33
    $region32: #{tpu_custom_call.1} parent=1 // pred_region
      _
    $region33: #{tpu_custom_call.1} parent=1 // pred_fallthru
      _
    // Predicated region
    $region34: #{tpu_custom_call.1} parent=1 // pred_check
      _
    $region35: #{tpu_custom_call.1} parent=1 // pred_check_branch
      %44 = sbr.rel (0) target = $region37
    $region36: #{tpu_custom_call.1} parent=1 // pred_region
      _
    $region37: #{tpu_custom_call.1} parent=1 // pred_fallthru
      _
    // Predicated region
    $region38: #{tpu_custom_call.1} parent=1 // pred_check
      _
    $region39: #{tpu_custom_call.1} parent=1 // pred_check_branch
      %46 = sbr.rel (0) target = $region41
    $region40: #{tpu_custom_call.1} parent=1 // pred_region
      _
    $region41: #{tpu_custom_call.1} parent=1 // pred_fallthru
      _
    // Predicated region
    $region42: #{tpu_custom_call.1} parent=1 // pred_check
      _
    $region43: #{tpu_custom_call.1} parent=1 // pred_check_branch
      %48 = sbr.rel (0) target = $region45
    $region44: #{tpu_custom_call.1} parent=1 // pred_region
      %49 = dma.done [#allocation3], 32768
    $region45: #{tpu_custom_call.1} parent=1 // pred_fallthru
      _
    %v50 = vld [vmem:[%s9] sm:$0x1]
    %v51 = vld [vmem:[%s0] sm:$0xff]
    %v52 = vld [vmem:[%s0 + $0x8] sm:$0xff]
    %v53 = vld [vmem:[%s0 + $0x10] sm:$0xf]
    %v54 = vld [vmem:[%s0 + $0x18] sm:$0xf]
    %v55 = vld [vmem:[%s2] sm:$0xff]
    %v56 = vld [vmem:[%s2 + $0x8] sm:$0xff]
    %v57 = vld [vmem:[%s2 + $0x10] sm:$0xff]
    %v58 = vld [vmem:[%s2 + $0x18] sm:$0xff]
    %v59 = vld [vmem:[%s2 + $0x20] sm:$0xff]
    %v60 = vld [vmem:[%s2 + $0x28] sm:$0xff]
    %v61 = vld [vmem:[%s2 + $0x30] sm:$0xff]
    %v62 = vld [vmem:[%s2 + $0x38] sm:$0xff]
    %v63 = vld [vmem:[%s2 + $0x40] sm:$0xff]
    %v64 = vld [vmem:[%s2 + $0x48] sm:$0xff]
    %v65 = vld [vmem:[%s2 + $0x50] sm:$0xff]
    %v66 = vld [vmem:[%s2 + $0x58] sm:$0xff]
    %v67 = vld [vmem:[%s2 + $0x60] sm:$0xff]
    %v68 = vld [vmem:[%s2 + $0x68] sm:$0xff]
    %v69 = vld [vmem:[%s2 + $0x70] sm:$0xff]
    %v70 = vld [vmem:[%s2 + $0x78] sm:$0xff]
    %v71 = vld [vmem:[%s2 + $0x80] sm:$0xff]
    %v72 = vld [vmem:[%s2 + $0x88] sm:$0xff]
    %v73 = vld [vmem:[%s2 + $0x90] sm:$0xff]
    %v74 = vld [vmem:[%s2 + $0x98] sm:$0xff]
    %v75 = vld [vmem:[%s2 + $0xa0] sm:$0xff]
    %v76 = vld [vmem:[%s2 + $0xa8] sm:$0xff]
    %v77 = vld [vmem:[%s2 + $0xb0] sm:$0xff]
    %v78 = vld [vmem:[%s2 + $0xb8] sm:$0xff]
    %v79 = vld [vmem:[%s2 + $0xc0] sm:$0xff]
    %v80 = vld [vmem:[%s2 + $0xc8] sm:$0xff]
    %v81 = vld [vmem:[%s2 + $0xd0] sm:$0xff]
    %v82 = vld [vmem:[%s2 + $0xd8] sm:$0xff]
    %v83 = vld [vmem:[%s2 + $0xe0] sm:$0xff]
    %v84 = vld [vmem:[%s2 + $0xe8] sm:$0xff]
    %v85 = vld [vmem:[%s2 + $0xf0] sm:$0xff]
    %v86 = vld [vmem:[%s2 + $0xf8] sm:$0xff]
    %87 = vmatprep.subr.mxu0 0.0
    %88 = vmatpush1.msra.mxu0 %v55
    %89 = vmatprep.subr.mxu0 0.0
    %90 = vmatpush1.msra.mxu0 %v56
    %91 = vmatprep.subr.mxu0 0.0
    %92 = vmatpush1.msra.mxu0 %v57
    %93 = vmatprep.subr.mxu0 0.0
    %94 = vmatpush1.msra.mxu0 %v58
    %95 = vmatprep.subr.mxu0 0.0
    %96 = vmatpush1.msra.mxu0 %v59
    %97 = vmatprep.subr.mxu0 0.0
    %98 = vmatpush1.msra.mxu0 %v60
    %99 = vmatprep.subr.mxu0 0.0
    %100 = vmatpush1.msra.mxu0 %v61
    %101 = vmatprep.subr.mxu0 0.0
    %102 = vmatpush1.msra.mxu0 %v62
    %103 = vmatprep.subr.mxu0 0.0
    %104 = vmatpush1.msra.mxu0 %v63
    %105 = vmatprep.subr.mxu0 0.0
    %106 = vmatpush1.msra.mxu0 %v64
    %107 = vmatprep.subr.mxu0 0.0
    %108 = vmatpush1.msra.mxu0 %v65
    %109 = vmatprep.subr.mxu0 0.0
    %110 = vmatpush1.msra.mxu0 %v66
    %111 = vmatprep.subr.mxu0 0.0
    %112 = vmatpush1.msra.mxu0 %v67
    %113 = vmatprep.subr.mxu0 0.0
    %114 = vmatpush1.msra.mxu0 %v68
    %115 = vmatprep.subr.mxu0 0.0
    %116 = vmatpush1.msra.mxu0 %v69
    %117 = vmatprep.subr.mxu0 0.0
    %118 = vmatpush1.msra.mxu0 %v70
    %119 = vmatprep.subr.mxu0 0.0
    %120 = vmatpush1.msra.mxu0 %v71
    %121 = vmatprep.subr.mxu0 0.0
    %122 = vmatpush1.msra.mxu0 %v72
    %123 = vmatprep.subr.mxu0 0.0
    %124 = vmatpush1.msra.mxu0 %v73
    %125 = vmatprep.subr.mxu0 0.0
    %126 = vmatpush1.msra.mxu0 %v74
    %127 = vmatprep.subr.mxu0 0.0
    %128 = vmatpush1.msra.mxu0 %v75
    %129 = vmatprep.subr.mxu0 0.0
    %130 = vmatpush1.msra.mxu0 %v76
    %131 = vmatprep.subr.mxu0 0.0
    %132 = vmatpush1.msra.mxu0 %v77
    %133 = vmatprep.subr.mxu0 0.0
    %134 = vmatpush1.msra.mxu0 %v78
    %135 = vmatprep.subr.mxu0 0.0
    %136 = vmatpush1.msra.mxu0 %v79
    %137 = vmatprep.subr.mxu0 0.0
    %138 = vmatpush1.msra.mxu0 %v80
    %139 = vmatprep.subr.mxu0 0.0
    %140 = vmatpush1.msra.mxu0 %v81
    %141 = vmatprep.subr.mxu0 0.0
    %142 = vmatpush1.msra.mxu0 %v82
    %143 = vmatprep.subr.mxu0 0.0
    %144 = vmatpush1.msra.mxu0 %v83
    %145 = vmatprep.subr.mxu0 0.0
    %146 = vmatpush1.msra.mxu0 %v84
    %147 = vmatprep.subr.mxu0 0.0
    %148 = vmatpush1.msra.mxu0 %v85
    %149 = vmatprep.subr.mxu0 0.0
    %150 = vmatpush1.msra.mxu0 %v86
    %151 = vmatprep.mubr.f32.mxu0 %v52
    %152 = vmatmul.mubr.f32.gmra.mrb[0].mxu0 %v51
    %v153 = vpop.f32.mrb[0].mxu0
    %v154 = vadd.f32 0.0, %v153
    %v155 = vpop.f32.mrb[0].mxu0
    %156 = vmatprep.mubr.f32.mxu0 %v54
    %157 = vmatmul.mubr.f32.gmra.mrb[0].mxu0 %v53
    %v158 = vpop.f32.mrb[0].mxu0
    %v159 = vadd.f32 0.0, %v158
    %v160 = vpop.f32.mrb[0].mxu0
    %161 = vdwg.mxu0
    %v162 = vld [vmem:[%s4] sm:$0xff]
    %v163 = vld [vmem:[%s4 + $0x8] sm:$0xff]
    %v164 = vld [vmem:[%s4 + $0x10] sm:$0xff]
    %vm165 = vcmask 97280
    %v167 = vsel %vm165, %v162, 0
    %v170 = vsel %vm165, %v163, 0
    %v173 = vsel %vm165, %v164, 0
    %vm175 = vcmask 1043456
    %v177 = vsel %vm175, %v159, 0
    %179 = vmatprep.subr.mxu0 0.0
    %180 = vmatpush1.msra.mxu0 %v154
    %181 = vmatprep.subr.mxu0 0.0
    %182 = vmatpush1.msra.mxu0 %v177
    %183 = vmatprep.subr.mxu0 0.0
    %184 = vmatpush1.msra.mxu0 0.0
    %185 = vmatprep.subr.mxu0 0.0
    %186 = vmatpush1.msra.mxu0 0.0
    %187 = vmatprep.subr.mxu0 0.0
    %188 = vmatpush1.msra.mxu0 0.0
    %189 = vmatprep.subr.mxu0 0.0
    %190 = vmatpush1.msra.mxu0 0.0
    %191 = vmatprep.subr.mxu0 0.0
    %192 = vmatpush1.msra.mxu0 0.0
    %193 = vmatprep.subr.mxu0 0.0
    %194 = vmatpush1.msra.mxu0 0.0
    %195 = vmatprep.subr.mxu0 0.0
    %196 = vmatpush1.msra.mxu0 0.0
    %197 = vmatprep.subr.mxu0 0.0
    %198 = vmatpush1.msra.mxu0 0.0
    %199 = vmatprep.subr.mxu0 0.0
    %200 = vmatpush1.msra.mxu0 0.0
    %201 = vmatprep.subr.mxu0 0.0
    %202 = vmatpush1.msra.mxu0 0.0
    %203 = vmatprep.subr.mxu0 0.0
    %204 = vmatpush1.msra.mxu0 0.0
    %205 = vmatprep.subr.mxu0 0.0
    %206 = vmatpush1.msra.mxu0 0.0
    %207 = vmatprep.subr.mxu0 0.0
    %208 = vmatpush1.msra.mxu0 0.0
    %209 = vmatprep.subr.mxu0 0.0
    %210 = vmatpush1.msra.mxu0 0.0
    %211 = vmatprep.subr.mxu0 0.0
    %212 = vmatpush1.msra.mxu0 0.0
    %213 = vmatprep.subr.mxu0 0.0
    %214 = vmatpush1.msra.mxu0 0.0
    %215 = vmatprep.subr.mxu0 0.0
    %216 = vmatpush1.msra.mxu0 0.0
    %217 = vmatprep.subr.mxu0 0.0
    %218 = vmatpush1.msra.mxu0 0.0
    %219 = vmatprep.subr.mxu0 0.0
    %220 = vmatpush1.msra.mxu0 0.0
    %221 = vmatprep.subr.mxu0 0.0
    %222 = vmatpush1.msra.mxu0 0.0
    %223 = vmatprep.subr.mxu0 0.0
    %224 = vmatpush1.msra.mxu0 0.0
    %225 = vmatprep.subr.mxu0 0.0
    %226 = vmatpush1.msra.mxu0 0.0
    %227 = vmatprep.subr.mxu0 0.0
    %228 = vmatpush1.msra.mxu0 0.0
    %229 = vmatprep.subr.mxu0 0.0
    %230 = vmatpush1.msra.mxu0 0.0
    %231 = vmatprep.subr.mxu0 0.0
    %232 = vmatpush1.msra.mxu0 0.0
    %233 = vmatprep.subr.mxu0 0.0
    %234 = vmatpush1.msra.mxu0 0.0
    %235 = vmatprep.subr.mxu0 0.0
    %236 = vmatpush1.msra.mxu0 0.0
    %237 = vmatprep.subr.mxu0 0.0
    %238 = vmatpush1.msra.mxu0 0.0
    %239 = vmatprep.subr.mxu0 0.0
    %240 = vmatpush1.msra.mxu0 0.0
    %241 = vmatprep.subr.mxu0 0.0
    %242 = vmatpush1.msra.mxu0 0.0
    %243 = vmatprep.mubr.f32.mxu0 0.0
    %244 = vmatmul.mubr.f32.gmra.mrb[0].mxu0 %v167
    %v245 = vpop.f32.mrb[0].mxu0
    %v246 = vadd.f32 0.0, %v245
    %v247 = vpop.f32.mrb[0].mxu0
    %248 = vmatprep.mubr.f32.mxu0 0.0
    %249 = vmatmul.mubr.f32.gmra.mrb[0].mxu0 %v170
    %v250 = vpop.f32.mrb[0].mxu0
    %v251 = vadd.f32 0.0, %v250
    %v252 = vpop.f32.mrb[0].mxu0
    %253 = vmatprep.mubr.f32.mxu0 0.0
    %254 = vmatmul.mubr.f32.gmra.mrb[0].mxu0 %v173
    %v255 = vpop.f32.mrb[0].mxu0
    %v256 = vadd.f32 0.0, %v255
    %v257 = vpop.f32.mrb[0].mxu0
    %258 = vdwg.mxu0
    %vm259 = vcmask 523264
    %v260 = vsel %vm259, %v246, 0.0
    %261 = vadd.xlane.f32.xlu0 %v260
    %v262 = vpop.xlane.xlu0 %261
    %v263 = vsel %vm259, %v251, 0.0
    %264 = vadd.xlane.f32.xlu0 %v263
    %v265 = vpop.xlane.xlu0 %264
    %v266 = vsel %vm259, %v256, 0.0
    %267 = vadd.xlane.f32.xlu0 %v266
    %v268 = vpop.xlane.xlu0 %267
    %v269 = vmul.f32 %v262, 0.015625
    %v270 = vmul.f32 %v265, 0.015625
    %v271 = vmul.f32 %v268, 0.015625
    %v272 = vld [vmem:[%s5] sm:$0x7]
    %v273 = vld [vmem:[%s6] sm:$0xff]
    %v274 = vld [vmem:[%s6 + $0x8] sm:$0xff]
    %v275 = vld [vmem:[%s6 + $0x10] sm:$0xff]
    %v276 = vmul.f32 %v269, %v273
    %v277 = vmul.f32 %v270, %v274
    %v278 = vmul.f32 %v271, %v275
    %v280 = vlaneseq
    %v281 = vshrl.u32 %v280, 7
    %v282 = vsub.s32 0, %v281
    %v283 = vrot.slane %v50, %v282
    %vm285 = vcmask 195584
    %v287 = vsel %vm285, %v272, 0
    %289 = vmatprep.subr.mxu0 0.0
    %290 = vmatpush1.msra.mxu0 %v276
    %291 = vmatprep.subr.mxu0 0.0
    %292 = vmatpush1.msra.mxu0 %v277
    %293 = vmatprep.subr.mxu0 0.0
    %294 = vmatpush1.msra.mxu0 %v278
    %295 = vmatprep.subr.mxu0 0.0
    %296 = vmatpush1.msra.mxu0 0.0
    %297 = vmatprep.subr.mxu0 0.0
    %298 = vmatpush1.msra.mxu0 0.0
    %299 = vmatprep.subr.mxu0 0.0
    %300 = vmatpush1.msra.mxu0 0.0
    %301 = vmatprep.subr.mxu0 0.0
    %302 = vmatpush1.msra.mxu0 0.0
    %303 = vmatprep.subr.mxu0 0.0
    %304 = vmatpush1.msra.mxu0 0.0
    %305 = vmatprep.subr.mxu0 0.0
    %306 = vmatpush1.msra.mxu0 0.0
    %307 = vmatprep.subr.mxu0 0.0
    %308 = vmatpush1.msra.mxu0 0.0
    %309 = vmatprep.subr.mxu0 0.0
    %310 = vmatpush1.msra.mxu0 0.0
    %311 = vmatprep.subr.mxu0 0.0
    %312 = vmatpush1.msra.mxu0 0.0
    %313 = vmatprep.subr.mxu0 0.0
    %314 = vmatpush1.msra.mxu0 0.0
    %315 = vmatprep.subr.mxu0 0.0
    %316 = vmatpush1.msra.mxu0 0.0
    %317 = vmatprep.subr.mxu0 0.0
    %318 = vmatpush1.msra.mxu0 0.0
    %319 = vmatprep.subr.mxu0 0.0
    %320 = vmatpush1.msra.mxu0 0.0
    %321 = vmatprep.subr.mxu0 0.0
    %322 = vmatpush1.msra.mxu0 0.0
    %323 = vmatprep.subr.mxu0 0.0
    %324 = vmatpush1.msra.mxu0 0.0
    %325 = vmatprep.subr.mxu0 0.0
    %326 = vmatpush1.msra.mxu0 0.0
    %327 = vmatprep.subr.mxu0 0.0
    %328 = vmatpush1.msra.mxu0 0.0
    %329 = vmatprep.subr.mxu0 0.0
    %330 = vmatpush1.msra.mxu0 0.0
    %331 = vmatprep.subr.mxu0 0.0
    %332 = vmatpush1.msra.mxu0 0.0
    %333 = vmatprep.subr.mxu0 0.0
    %334 = vmatpush1.msra.mxu0 0.0
    %335 = vmatprep.subr.mxu0 0.0
    %336 = vmatpush1.msra.mxu0 0.0
    %337 = vmatprep.subr.mxu0 0.0
    %338 = vmatpush1.msra.mxu0 0.0
    %339 = vmatprep.subr.mxu0 0.0
    %340 = vmatpush1.msra.mxu0 0.0
    %341 = vmatprep.subr.mxu0 0.0
    %342 = vmatpush1.msra.mxu0 0.0
    %343 = vmatprep.subr.mxu0 0.0
    %344 = vmatpush1.msra.mxu0 0.0
    %345 = vmatprep.subr.mxu0 0.0
    %346 = vmatpush1.msra.mxu0 0.0
    %347 = vmatprep.subr.mxu0 0.0
    %348 = vmatpush1.msra.mxu0 0.0
    %349 = vmatprep.subr.mxu0 0.0
    %350 = vmatpush1.msra.mxu0 0.0
    %351 = vmatprep.subr.mxu0 0.0
    %352 = vmatpush1.msra.mxu0 0.0
    %353 = vmatprep.mubr.f32.mxu0 0.0
    %354 = vmatmul.mubr.f32.gmra.mrb[0].mxu0 %v287
    %v355 = vpop.f32.mrb[0].mxu0
    %v356 = vadd.f32 %v283, %v355
    %v357 = vpop.f32.mrb[0].mxu0
    %358 = vdwg.mxu0
    %v359 = vld [vmem:[%s3] sm:$0xff]
    %v360 = vld [vmem:[%s3 + $0x8] sm:$0xff]
    %v361 = vld [vmem:[%s3 + $0x10] sm:$0xff]
    %v362 = vld [vmem:[%s3 + $0x18] sm:$0xff]
    %v363 = vld [vmem:[%s3 + $0x20] sm:$0xff]
    %v364 = vld [vmem:[%s3 + $0x28] sm:$0xff]
    %v365 = vld [vmem:[%s3 + $0x30] sm:$0xff]
    %v366 = vld [vmem:[%s3 + $0x38] sm:$0xff]
    %v367 = vld [vmem:[%s3 + $0x40] sm:$0xff]
    %v368 = vld [vmem:[%s3 + $0x48] sm:$0xff]
    %v369 = vld [vmem:[%s3 + $0x50] sm:$0xff]
    %v370 = vld [vmem:[%s3 + $0x58] sm:$0xff]
    %v371 = vld [vmem:[%s3 + $0x60] sm:$0xff]
    %v372 = vld [vmem:[%s3 + $0x68] sm:$0xff]
    %v373 = vld [vmem:[%s3 + $0x70] sm:$0xff]
    %v374 = vld [vmem:[%s3 + $0x78] sm:$0xff]
    %v376 = vsel %vm259, %v256, 0
    %378 = vmatprep.subr.mxu0 %v360
    %379 = vmatpush1.msra.mxu0 %v359
    %380 = vmatprep.subr.mxu0 %v362
    %381 = vmatpush1.msra.mxu0 %v361
    %382 = vmatprep.subr.mxu0 %v364
    %383 = vmatpush1.msra.mxu0 %v363
    %384 = vmatprep.subr.mxu0 %v366
    %385 = vmatpush1.msra.mxu0 %v365
    %386 = vmatprep.subr.mxu0 %v368
    %387 = vmatpush1.msra.mxu0 %v367
    %388 = vmatprep.subr.mxu0 %v370
    %389 = vmatpush1.msra.mxu0 %v369
    %390 = vmatprep.subr.mxu0 %v372
    %391 = vmatpush1.msra.mxu0 %v371
    %392 = vmatprep.subr.mxu0 %v374
    %393 = vmatpush1.msra.mxu0 %v373
    %394 = vmatprep.subr.mxu0 0.0
    %395 = vmatpush1.msra.mxu0 0.0
    %396 = vmatprep.subr.mxu0 0.0
    %397 = vmatpush1.msra.mxu0 0.0
    %398 = vmatprep.subr.mxu0 0.0
    %399 = vmatpush1.msra.mxu0 0.0
    %400 = vmatprep.subr.mxu0 0.0
    %401 = vmatpush1.msra.mxu0 0.0
    %402 = vmatprep.subr.mxu0 0.0
    %403 = vmatpush1.msra.mxu0 0.0
    %404 = vmatprep.subr.mxu0 0.0
    %405 = vmatpush1.msra.mxu0 0.0
    %406 = vmatprep.subr.mxu0 0.0
    %407 = vmatpush1.msra.mxu0 0.0
    %408 = vmatprep.subr.mxu0 0.0
    %409 = vmatpush1.msra.mxu0 0.0
    %410 = vmatprep.subr.mxu0 0.0
    %411 = vmatpush1.msra.mxu0 0.0
    %412 = vmatprep.subr.mxu0 0.0
    %413 = vmatpush1.msra.mxu0 0.0
    %414 = vmatprep.subr.mxu0 0.0
    %415 = vmatpush1.msra.mxu0 0.0
    %416 = vmatprep.subr.mxu0 0.0
    %417 = vmatpush1.msra.mxu0 0.0
    %418 = vmatprep.subr.mxu0 0.0
    %419 = vmatpush1.msra.mxu0 0.0
    %420 = vmatprep.subr.mxu0 0.0
    %421 = vmatpush1.msra.mxu0 0.0
    %422 = vmatprep.subr.mxu0 0.0
    %423 = vmatpush1.msra.mxu0 0.0
    %424 = vmatprep.subr.mxu0 0.0
    %425 = vmatpush1.msra.mxu0 0.0
    %426 = vmatprep.subr.mxu0 0.0
    %427 = vmatpush1.msra.mxu0 0.0
    %428 = vmatprep.subr.mxu0 0.0
    %429 = vmatpush1.msra.mxu0 0.0
    %430 = vmatprep.subr.mxu0 0.0
    %431 = vmatpush1.msra.mxu0 0.0
    %432 = vmatprep.subr.mxu0 0.0
    %433 = vmatpush1.msra.mxu0 0.0
    %434 = vmatprep.subr.mxu0 0.0
    %435 = vmatpush1.msra.mxu0 0.0
    %436 = vmatprep.subr.mxu0 0.0
    %437 = vmatpush1.msra.mxu0 0.0
    %438 = vmatprep.subr.mxu0 0.0
    %439 = vmatpush1.msra.mxu0 0.0
    %440 = vmatprep.subr.mxu0 0.0
    %441 = vmatpush1.msra.mxu0 0.0
    %442 = vmatprep.mubr.f32.mxu0 0.0
    %443 = vmatmul.mubr.f32.gmra.mrb[0].mxu0 %v376
    %v444 = vpop.f32.mrb[0].mxu0
    %v445 = vadd.f32 0.0, %v444
    %v446 = vpop.f32.mrb[0].mxu0
    %v447 = vadd.f32 0.0, %v446
    %448 = vdwg.mxu0
    %v449 = vmin.f32 %v445, %v447
    %450 = vmin.xlane.f32.xlu0 %v449
    %v451 = vpop.xlane.xlu0 %450
    %v452 = vmax.f32 %v445, %v447
    %453 = vmax.xlane.f32.xlu0 %v452
    %v454 = vpop.xlane.xlu0 %453
    %vm455 = vcmp.gt.f32.partialorder %v454, %v451
    %v456 = vsub.f32 %v454, %v451
    %v457 = vsel %vm455, %v456, 1.0
    %v458 = vrcp.pop %v457
    %v459 = vmul.f32 1.0, %v458
    %v460 = vsub.f32 %v445, %v451
    %v461 = vsub.f32 %v447, %v451
    %v462 = vmul.f32 %v460, %v459
    %v463 = vmul.f32 %v461, %v459
    %v464 = vsub.f32 1.0, %v462
    %v465 = vsub.f32 1.0, %v463
    %v466 = vld [vmem:[#allocation2] sm:$0xff]
    %v467 = vld [vmem:[#allocation2 + $0x8] sm:$0xff]
    %v468 = vld [vmem:[#allocation2 + $0x10] sm:$0xff]
    %v469 = vld [vmem:[#allocation2 + $0x18] sm:$0xff]
    %v470 = vld [vmem:[#allocation2 + $0x20] sm:$0xff]
    %v471 = vld [vmem:[#allocation2 + $0x28] sm:$0xff]
    %v472 = vld [vmem:[#allocation2 + $0x30] sm:$0xff]
    %v473 = vld [vmem:[#allocation2 + $0x38] sm:$0xff]
    %v474 = vld [vmem:[#allocation2 + $0x40] sm:$0xff]
    %v475 = vld [vmem:[#allocation2 + $0x48] sm:$0xff]
    %v476 = vld [vmem:[#allocation2 + $0x50] sm:$0xff]
    %v477 = vld [vmem:[#allocation2 + $0x58] sm:$0xff]
    %v478 = vld [vmem:[#allocation2 + $0x60] sm:$0xff]
    %v479 = vld [vmem:[#allocation2 + $0x68] sm:$0xff]
    %v480 = vld [vmem:[#allocation2 + $0x70] sm:$0xff]
    %v481 = vld [vmem:[#allocation2 + $0x78] sm:$0xff]
    %v482 = vld [vmem:[#allocation2 + $0x80] sm:$0xff]
    %v483 = vld [vmem:[#allocation2 + $0x88] sm:$0xff]
    %v484 = vld [vmem:[#allocation2 + $0x90] sm:$0xff]
    %v485 = vld [vmem:[#allocation2 + $0x98] sm:$0xff]
    %v486 = vld [vmem:[#allocation2 + $0xa0] sm:$0xff]
    %v487 = vld [vmem:[#allocation2 + $0xa8] sm:$0xff]
    %v488 = vld [vmem:[#allocation2 + $0xb0] sm:$0xff]
    %v489 = vld [vmem:[#allocation2 + $0xb8] sm:$0xff]
    %v490 = vld [vmem:[#allocation2 + $0xc0] sm:$0xff]
    %v491 = vld [vmem:[#allocation2 + $0xc8] sm:$0xff]
    %v492 = vld [vmem:[#allocation2 + $0xd0] sm:$0xff]
    %v493 = vld [vmem:[#allocation2 + $0xd8] sm:$0xff]
    %v494 = vld [vmem:[#allocation2 + $0xe0] sm:$0xff]
    %v495 = vld [vmem:[#allocation2 + $0xe8] sm:$0xff]
    %v496 = vld [vmem:[#allocation2 + $0xf0] sm:$0xff]
    %v497 = vld [vmem:[#allocation2 + $0xf8] sm:$0xff]
    %v498 = vld [vmem:[#allocation2 + $0x100] sm:$0xff]
    %v499 = vld [vmem:[#allocation2 + $0x108] sm:$0xff]
    %v500 = vld [vmem:[#allocation2 + $0x110] sm:$0xff]
    %v501 = vld [vmem:[#allocation2 + $0x118] sm:$0xff]
    %v502 = vld [vmem:[#allocation2 + $0x120] sm:$0xff]
    %v503 = vld [vmem:[#allocation2 + $0x128] sm:$0xff]
    %v504 = vld [vmem:[#allocation2 + $0x130] sm:$0xff]
    %v505 = vld [vmem:[#allocation2 + $0x138] sm:$0xff]
    %v506 = vld [vmem:[#allocation2 + $0x140] sm:$0xff]
    %v507 = vld [vmem:[#allocation2 + $0x148] sm:$0xff]
    %v508 = vld [vmem:[#allocation2 + $0x150] sm:$0xff]
    %v509 = vld [vmem:[#allocation2 + $0x158] sm:$0xff]
    %v510 = vld [vmem:[#allocation2 + $0x160] sm:$0xff]
    %v511 = vld [vmem:[#allocation2 + $0x168] sm:$0xff]
    %v512 = vld [vmem:[#allocation2 + $0x170] sm:$0xff]
    %v513 = vld [vmem:[#allocation2 + $0x178] sm:$0xff]
    %v514 = vld [vmem:[#allocation2 + $0x180] sm:$0xff]
    %v515 = vld [vmem:[#allocation2 + $0x188] sm:$0xff]
    %v516 = vld [vmem:[#allocation2 + $0x190] sm:$0xff]
    %v517 = vld [vmem:[#allocation2 + $0x198] sm:$0xff]
    %v518 = vld [vmem:[#allocation2 + $0x1a0] sm:$0xff]
    %v519 = vld [vmem:[#allocation2 + $0x1a8] sm:$0xff]
    %v520 = vld [vmem:[#allocation2 + $0x1b0] sm:$0xff]
    %v521 = vld [vmem:[#allocation2 + $0x1b8] sm:$0xff]
    %v522 = vld [vmem:[#allocation2 + $0x1c0] sm:$0xff]
    %v523 = vld [vmem:[#allocation2 + $0x1c8] sm:$0xff]
    %v524 = vld [vmem:[#allocation2 + $0x1d0] sm:$0xff]
    %v525 = vld [vmem:[#allocation2 + $0x1d8] sm:$0xff]
    %v526 = vld [vmem:[#allocation2 + $0x1e0] sm:$0xff]
    %v527 = vld [vmem:[#allocation2 + $0x1e8] sm:$0xff]
    %v528 = vld [vmem:[#allocation2 + $0x1f0] sm:$0xff]
    %v529 = vld [vmem:[#allocation2 + $0x1f8] sm:$0xff]
    %v530 = vld [vmem:[#allocation2 + $0x200] sm:$0xff]
    %v531 = vld [vmem:[#allocation2 + $0x208] sm:$0xff]
    %v532 = vld [vmem:[#allocation2 + $0x210] sm:$0xff]
    %v533 = vld [vmem:[#allocation2 + $0x218] sm:$0xff]
    %v534 = vld [vmem:[#allocation2 + $0x220] sm:$0xff]
    %v535 = vld [vmem:[#allocation2 + $0x228] sm:$0xff]
    %v536 = vld [vmem:[#allocation2 + $0x230] sm:$0xff]
    %v537 = vld [vmem:[#allocation2 + $0x238] sm:$0xff]
    %v538 = vld [vmem:[#allocation2 + $0x240] sm:$0xff]
    %v539 = vld [vmem:[#allocation2 + $0x248] sm:$0xff]
    %v540 = vld [vmem:[#allocation2 + $0x250] sm:$0xff]
    %v541 = vld [vmem:[#allocation2 + $0x258] sm:$0xff]
    %v542 = vld [vmem:[#allocation2 + $0x260] sm:$0xff]
    %v543 = vld [vmem:[#allocation2 + $0x268] sm:$0xff]
    %v544 = vld [vmem:[#allocation2 + $0x270] sm:$0xff]
    %v545 = vld [vmem:[#allocation2 + $0x278] sm:$0xff]
    %v546 = vld [vmem:[#allocation2 + $0x280] sm:$0xff]
    %v547 = vld [vmem:[#allocation2 + $0x288] sm:$0xff]
    %v548 = vld [vmem:[#allocation2 + $0x290] sm:$0xff]
    %v549 = vld [vmem:[#allocation2 + $0x298] sm:$0xff]
    %v550 = vld [vmem:[#allocation2 + $0x2a0] sm:$0xff]
    %v551 = vld [vmem:[#allocation2 + $0x2a8] sm:$0xff]
    %v552 = vld [vmem:[#allocation2 + $0x2b0] sm:$0xff]
    %v553 = vld [vmem:[#allocation2 + $0x2b8] sm:$0xff]
    %v554 = vld [vmem:[#allocation2 + $0x2c0] sm:$0xff]
    %v555 = vld [vmem:[#allocation2 + $0x2c8] sm:$0xff]
    %v556 = vld [vmem:[#allocation2 + $0x2d0] sm:$0xff]
    %v557 = vld [vmem:[#allocation2 + $0x2d8] sm:$0xff]
    %v558 = vld [vmem:[#allocation2 + $0x2e0] sm:$0xff]
    %v559 = vld [vmem:[#allocation2 + $0x2e8] sm:$0xff]
    %v560 = vld [vmem:[#allocation2 + $0x2f0] sm:$0xff]
    %v561 = vld [vmem:[#allocation2 + $0x2f8] sm:$0xff]
    %v562 = vld [vmem:[#allocation2 + $0x300] sm:$0xff]
    %v563 = vld [vmem:[#allocation2 + $0x308] sm:$0xff]
    %v564 = vld [vmem:[#allocation2 + $0x310] sm:$0xff]
    %v565 = vld [vmem:[#allocation2 + $0x318] sm:$0xff]
    %v566 = vld [vmem:[#allocation2 + $0x320] sm:$0xff]
    %v567 = vld [vmem:[#allocation2 + $0x328] sm:$0xff]
    %v568 = vld [vmem:[#allocation2 + $0x330] sm:$0xff]
    %v569 = vld [vmem:[#allocation2 + $0x338] sm:$0xff]
    %v570 = vld [vmem:[#allocation2 + $0x340] sm:$0xff]
    %v571 = vld [vmem:[#allocation2 + $0x348] sm:$0xff]
    %v572 = vld [vmem:[#allocation2 + $0x350] sm:$0xff]
    %v573 = vld [vmem:[#allocation2 + $0x358] sm:$0xff]
    %v574 = vld [vmem:[#allocation2 + $0x360] sm:$0xff]
    %v575 = vld [vmem:[#allocation2 + $0x368] sm:$0xff]
    %v576 = vld [vmem:[#allocation2 + $0x370] sm:$0xff]
    %v577 = vld [vmem:[#allocation2 + $0x378] sm:$0xff]
    %v578 = vld [vmem:[#allocation2 + $0x380] sm:$0xff]
    %v579 = vld [vmem:[#allocation2 + $0x388] sm:$0xff]
    %v580 = vld [vmem:[#allocation2 + $0x390] sm:$0xff]
    %v581 = vld [vmem:[#allocation2 + $0x398] sm:$0xff]
    %v582 = vld [vmem:[#allocation2 + $0x3a0] sm:$0xff]
    %v583 = vld [vmem:[#allocation2 + $0x3a8] sm:$0xff]
    %v584 = vld [vmem:[#allocation2 + $0x3b0] sm:$0xff]
    %v585 = vld [vmem:[#allocation2 + $0x3b8] sm:$0xff]
    %v586 = vld [vmem:[#allocation2 + $0x3c0] sm:$0xff]
    %v587 = vld [vmem:[#allocation2 + $0x3c8] sm:$0xff]
    %v588 = vld [vmem:[#allocation2 + $0x3d0] sm:$0xff]
    %v589 = vld [vmem:[#allocation2 + $0x3d8] sm:$0xff]
    %v590 = vld [vmem:[#allocation2 + $0x3e0] sm:$0xff]
    %v591 = vld [vmem:[#allocation2 + $0x3e8] sm:$0xff]
    %v592 = vld [vmem:[#allocation2 + $0x3f0] sm:$0xff]
    %v593 = vld [vmem:[#allocation2 + $0x3f8] sm:$0xff]
    %v594 = vld [vmem:[#allocation2 + $0x400] sm:$0xff]
    %v595 = vld [vmem:[#allocation2 + $0x408] sm:$0xff]
    %v596 = vld [vmem:[#allocation2 + $0x410] sm:$0xff]
    %v597 = vld [vmem:[#allocation2 + $0x418] sm:$0xff]
    %v598 = vld [vmem:[#allocation2 + $0x420] sm:$0xff]
    %v599 = vld [vmem:[#allocation2 + $0x428] sm:$0xff]
    %v600 = vld [vmem:[#allocation2 + $0x430] sm:$0xff]
    %v601 = vld [vmem:[#allocation2 + $0x438] sm:$0xff]
    %v602 = vld [vmem:[#allocation2 + $0x440] sm:$0xff]
    %v603 = vld [vmem:[#allocation2 + $0x448] sm:$0xff]
    %v604 = vld [vmem:[#allocation2 + $0x450] sm:$0xff]
    %v605 = vld [vmem:[#allocation2 + $0x458] sm:$0xff]
    %v606 = vld [vmem:[#allocation2 + $0x460] sm:$0xff]
    %v607 = vld [vmem:[#allocation2 + $0x468] sm:$0xff]
    %v608 = vld [vmem:[#allocation2 + $0x470] sm:$0xff]
    %v609 = vld [vmem:[#allocation2 + $0x478] sm:$0xff]
    %v610 = vld [vmem:[#allocation2 + $0x480] sm:$0xff]
    %v611 = vld [vmem:[#allocation2 + $0x488] sm:$0xff]
    %v612 = vld [vmem:[#allocation2 + $0x490] sm:$0xff]
    %v613 = vld [vmem:[#allocation2 + $0x498] sm:$0xff]
    %v614 = vld [vmem:[#allocation2 + $0x4a0] sm:$0xff]
    %v615 = vld [vmem:[#allocation2 + $0x4a8] sm:$0xff]
    %v616 = vld [vmem:[#allocation2 + $0x4b0] sm:$0xff]
    %v617 = vld [vmem:[#allocation2 + $0x4b8] sm:$0xff]
    %v618 = vld [vmem:[#allocation2 + $0x4c0] sm:$0xff]
    %v619 = vld [vmem:[#allocation2 + $0x4c8] sm:$0xff]
    %v620 = vld [vmem:[#allocation2 + $0x4d0] sm:$0xff]
    %v621 = vld [vmem:[#allocation2 + $0x4d8] sm:$0xff]
    %v622 = vld [vmem:[#allocation2 + $0x4e0] sm:$0xff]
    %v623 = vld [vmem:[#allocation2 + $0x4e8] sm:$0xff]
    %v624 = vld [vmem:[#allocation2 + $0x4f0] sm:$0xff]
    %v625 = vld [vmem:[#allocation2 + $0x4f8] sm:$0xff]
    %v626 = vld [vmem:[#allocation2 + $0x500] sm:$0xff]
    %v627 = vld [vmem:[#allocation2 + $0x508] sm:$0xff]
    %v628 = vld [vmem:[#allocation2 + $0x510] sm:$0xff]
    %v629 = vld [vmem:[#allocation2 + $0x518] sm:$0xff]
    %v630 = vld [vmem:[#allocation2 + $0x520] sm:$0xff]
    %v631 = vld [vmem:[#allocation2 + $0x528] sm:$0xff]
    %v632 = vld [vmem:[#allocation2 + $0x530] sm:$0xff]
    %v633 = vld [vmem:[#allocation2 + $0x538] sm:$0xff]
    %v634 = vld [vmem:[#allocation2 + $0x540] sm:$0xff]
    %v635 = vld [vmem:[#allocation2 + $0x548] sm:$0xff]
    %v636 = vld [vmem:[#allocation2 + $0x550] sm:$0xff]
    %v637 = vld [vmem:[#allocation2 + $0x558] sm:$0xff]
    %v638 = vld [vmem:[#allocation2 + $0x560] sm:$0xff]
    %v639 = vld [vmem:[#allocation2 + $0x568] sm:$0xff]
    %v640 = vld [vmem:[#allocation2 + $0x570] sm:$0xff]
    %v641 = vld [vmem:[#allocation2 + $0x578] sm:$0xff]
    %v642 = vld [vmem:[#allocation2 + $0x580] sm:$0xff]
    %v643 = vld [vmem:[#allocation2 + $0x588] sm:$0xff]
    %v644 = vld [vmem:[#allocation2 + $0x590] sm:$0xff]
    %v645 = vld [vmem:[#allocation2 + $0x598] sm:$0xff]
    %v646 = vld [vmem:[#allocation2 + $0x5a0] sm:$0xff]
    %v647 = vld [vmem:[#allocation2 + $0x5a8] sm:$0xff]
    %v648 = vld [vmem:[#allocation2 + $0x5b0] sm:$0xff]
    %v649 = vld [vmem:[#allocation2 + $0x5b8] sm:$0xff]
    %v650 = vld [vmem:[#allocation2 + $0x5c0] sm:$0xff]
    %v651 = vld [vmem:[#allocation2 + $0x5c8] sm:$0xff]
    %v652 = vld [vmem:[#allocation2 + $0x5d0] sm:$0xff]
    %v653 = vld [vmem:[#allocation2 + $0x5d8] sm:$0xff]
    %v654 = vld [vmem:[#allocation2 + $0x5e0] sm:$0xff]
    %v655 = vld [vmem:[#allocation2 + $0x5e8] sm:$0xff]
    %v656 = vld [vmem:[#allocation2 + $0x5f0] sm:$0xff]
    %v657 = vld [vmem:[#allocation2 + $0x5f8] sm:$0xff]
    %v658 = vld [vmem:[#allocation2 + $0x600] sm:$0xff]
    %v659 = vld [vmem:[#allocation2 + $0x608] sm:$0xff]
    %v660 = vld [vmem:[#allocation2 + $0x610] sm:$0xff]
    %v661 = vld [vmem:[#allocation2 + $0x618] sm:$0xff]
    %v662 = vld [vmem:[#allocation2 + $0x620] sm:$0xff]
    %v663 = vld [vmem:[#allocation2 + $0x628] sm:$0xff]
    %v664 = vld [vmem:[#allocation2 + $0x630] sm:$0xff]
    %v665 = vld [vmem:[#allocation2 + $0x638] sm:$0xff]
    %v666 = vld [vmem:[#allocation2 + $0x640] sm:$0xff]
    %v667 = vld [vmem:[#allocation2 + $0x648] sm:$0xff]
    %v668 = vld [vmem:[#allocation2 + $0x650] sm:$0xff]
    %v669 = vld [vmem:[#allocation2 + $0x658] sm:$0xff]
    %v670 = vld [vmem:[#allocation2 + $0x660] sm:$0xff]
    %v671 = vld [vmem:[#allocation2 + $0x668] sm:$0xff]
    %v672 = vld [vmem:[#allocation2 + $0x670] sm:$0xff]
    %v673 = vld [vmem:[#allocation2 + $0x678] sm:$0xff]
    %v674 = vld [vmem:[#allocation2 + $0x680] sm:$0xff]
    %v675 = vld [vmem:[#allocation2 + $0x688] sm:$0xff]
    %v676 = vld [vmem:[#allocation2 + $0x690] sm:$0xff]
    %v677 = vld [vmem:[#allocation2 + $0x698] sm:$0xff]
    %v678 = vld [vmem:[#allocation2 + $0x6a0] sm:$0xff]
    %v679 = vld [vmem:[#allocation2 + $0x6a8] sm:$0xff]
    %v680 = vld [vmem:[#allocation2 + $0x6b0] sm:$0xff]
    %v681 = vld [vmem:[#allocation2 + $0x6b8] sm:$0xff]
    %v682 = vld [vmem:[#allocation2 + $0x6c0] sm:$0xff]
    %v683 = vld [vmem:[#allocation2 + $0x6c8] sm:$0xff]
    %v684 = vld [vmem:[#allocation2 + $0x6d0] sm:$0xff]
    %v685 = vld [vmem:[#allocation2 + $0x6d8] sm:$0xff]
    %v686 = vld [vmem:[#allocation2 + $0x6e0] sm:$0xff]
    %v687 = vld [vmem:[#allocation2 + $0x6e8] sm:$0xff]
    %v688 = vld [vmem:[#allocation2 + $0x6f0] sm:$0xff]
    %v689 = vld [vmem:[#allocation2 + $0x6f8] sm:$0xff]
    %v690 = vld [vmem:[#allocation2 + $0x700] sm:$0xff]
    %v691 = vld [vmem:[#allocation2 + $0x708] sm:$0xff]
    %v692 = vld [vmem:[#allocation2 + $0x710] sm:$0xff]
    %v693 = vld [vmem:[#allocation2 + $0x718] sm:$0xff]
    %v694 = vld [vmem:[#allocation2 + $0x720] sm:$0xff]
    %v695 = vld [vmem:[#allocation2 + $0x728] sm:$0xff]
    %v696 = vld [vmem:[#allocation2 + $0x730] sm:$0xff]
    %v697 = vld [vmem:[#allocation2 + $0x738] sm:$0xff]
    %v698 = vld [vmem:[#allocation2 + $0x740] sm:$0xff]
    %v699 = vld [vmem:[#allocation2 + $0x748] sm:$0xff]
    %v700 = vld [vmem:[#allocation2 + $0x750] sm:$0xff]
    %v701 = vld [vmem:[#allocation2 + $0x758] sm:$0xff]
    %v702 = vld [vmem:[#allocation2 + $0x760] sm:$0xff]
    %v703 = vld [vmem:[#allocation2 + $0x768] sm:$0xff]
    %v704 = vld [vmem:[#allocation2 + $0x770] sm:$0xff]
    %v705 = vld [vmem:[#allocation2 + $0x778] sm:$0xff]
    %v706 = vld [vmem:[#allocation2 + $0x780] sm:$0xff]
    %v707 = vld [vmem:[#allocation2 + $0x788] sm:$0xff]
    %v708 = vld [vmem:[#allocation2 + $0x790] sm:$0xff]
    %v709 = vld [vmem:[#allocation2 + $0x798] sm:$0xff]
    %v710 = vld [vmem:[#allocation2 + $0x7a0] sm:$0xff]
    %v711 = vld [vmem:[#allocation2 + $0x7a8] sm:$0xff]
    %v712 = vld [vmem:[#allocation2 + $0x7b0] sm:$0xff]
    %v713 = vld [vmem:[#allocation2 + $0x7b8] sm:$0xff]
    %v714 = vld [vmem:[#allocation2 + $0x7c0] sm:$0xff]
    %v715 = vld [vmem:[#allocation2 + $0x7c8] sm:$0xff]
    %v716 = vld [vmem:[#allocation2 + $0x7d0] sm:$0xff]
    %v717 = vld [vmem:[#allocation2 + $0x7d8] sm:$0xff]
    %v718 = vld [vmem:[#allocation2 + $0x7e0] sm:$0xff]
    %v719 = vld [vmem:[#allocation2 + $0x7e8] sm:$0xff]
    %v720 = vld [vmem:[#allocation2 + $0x7f0] sm:$0xff]
    %v721 = vld [vmem:[#allocation2 + $0x7f8] sm:$0xff]
    %722 = vmatprep.subr.mxu0 %v467
    %723 = vmatpush1.msra.mxu0 %v466
    %724 = vmatprep.subr.mxu0 %v475
    %725 = vmatpush1.msra.mxu0 %v474
    %726 = vmatprep.subr.mxu0 %v483
    %727 = vmatpush1.msra.mxu0 %v482
    %728 = vmatprep.subr.mxu0 %v491
    %729 = vmatpush1.msra.mxu0 %v490
    %730 = vmatprep.subr.mxu0 %v499
    %731 = vmatpush1.msra.mxu0 %v498
    %732 = vmatprep.subr.mxu0 %v507
    %733 = vmatpush1.msra.mxu0 %v506
    %734 = vmatprep.subr.mxu0 %v515
    %735 = vmatpush1.msra.mxu0 %v514
    %736 = vmatprep.subr.mxu0 %v523
    %737 = vmatpush1.msra.mxu0 %v522
    %738 = vmatprep.subr.mxu0 %v531
    %739 = vmatpush1.msra.mxu0 %v530
    %740 = vmatprep.subr.mxu0 %v539
    %741 = vmatpush1.msra.mxu0 %v538
    %742 = vmatprep.subr.mxu0 %v547
    %743 = vmatpush1.msra.mxu0 %v546
    %744 = vmatprep.subr.mxu0 %v555
    %745 = vmatpush1.msra.mxu0 %v554
    %746 = vmatprep.subr.mxu0 %v563
    %747 = vmatpush1.msra.mxu0 %v562
    %748 = vmatprep.subr.mxu0 %v571
    %749 = vmatpush1.msra.mxu0 %v570
    %750 = vmatprep.subr.mxu0 %v579
    %751 = vmatpush1.msra.mxu0 %v578
    %752 = vmatprep.subr.mxu0 %v587
    %753 = vmatpush1.msra.mxu0 %v586
    %754 = vmatprep.subr.mxu0 %v595
    %755 = vmatpush1.msra.mxu0 %v594
    %756 = vmatprep.subr.mxu0 %v603
    %757 = vmatpush1.msra.mxu0 %v602
    %758 = vmatprep.subr.mxu0 %v611
    %759 = vmatpush1.msra.mxu0 %v610
    %760 = vmatprep.subr.mxu0 %v619
    %761 = vmatpush1.msra.mxu0 %v618
    %762 = vmatprep.subr.mxu0 %v627
    %763 = vmatpush1.msra.mxu0 %v626
    %764 = vmatprep.subr.mxu0 %v635
    %765 = vmatpush1.msra.mxu0 %v634
    %766 = vmatprep.subr.mxu0 %v643
    %767 = vmatpush1.msra.mxu0 %v642
    %768 = vmatprep.subr.mxu0 %v651
    %769 = vmatpush1.msra.mxu0 %v650
    %770 = vmatprep.subr.mxu0 %v659
    %771 = vmatpush1.msra.mxu0 %v658
    %772 = vmatprep.subr.mxu0 %v667
    %773 = vmatpush1.msra.mxu0 %v666
    %774 = vmatprep.subr.mxu0 %v675
    %775 = vmatpush1.msra.mxu0 %v674
    %776 = vmatprep.subr.mxu0 %v683
    %777 = vmatpush1.msra.mxu0 %v682
    %778 = vmatprep.subr.mxu0 %v691
    %779 = vmatpush1.msra.mxu0 %v690
    %780 = vmatprep.subr.mxu0 %v699
    %781 = vmatpush1.msra.mxu0 %v698
    %782 = vmatprep.subr.mxu0 %v707
    %783 = vmatpush1.msra.mxu0 %v706
    %784 = vmatprep.subr.mxu0 %v715
    %785 = vmatpush1.msra.mxu0 %v714
    %786 = vmatprep.mubr.f32.mxu0 %v465
    %787 = vmatmul.mubr.f32.gmra.mrb[0].mxu0 %v464
    %v788 = vpop.f32.mrb[0].mxu0
    %v789 = vadd.f32 0.0, %v788
    %v790 = vpop.f32.mrb[0].mxu0
    %v791 = vadd.f32 0.0, %v790
    %792 = vdwg.mxu0
    %793 = vmatprep.subr.mxu0 %v469
    %794 = vmatpush1.msra.mxu0 %v468
    %795 = vmatprep.subr.mxu0 %v477
    %796 = vmatpush1.msra.mxu0 %v476
    %797 = vmatprep.subr.mxu0 %v485
    %798 = vmatpush1.msra.mxu0 %v484
    %799 = vmatprep.subr.mxu0 %v493
    %800 = vmatpush1.msra.mxu0 %v492
    %801 = vmatprep.subr.mxu0 %v501
    %802 = vmatpush1.msra.mxu0 %v500
    %803 = vmatprep.subr.mxu0 %v509
    %804 = vmatpush1.msra.mxu0 %v508
    %805 = vmatprep.subr.mxu0 %v517
    %806 = vmatpush1.msra.mxu0 %v516
    %807 = vmatprep.subr.mxu0 %v525
    %808 = vmatpush1.msra.mxu0 %v524
    %809 = vmatprep.subr.mxu0 %v533
    %810 = vmatpush1.msra.mxu0 %v532
    %811 = vmatprep.subr.mxu0 %v541
    %812 = vmatpush1.msra.mxu0 %v540
    %813 = vmatprep.subr.mxu0 %v549
    %814 = vmatpush1.msra.mxu0 %v548
    %815 = vmatprep.subr.mxu0 %v557
    %816 = vmatpush1.msra.mxu0 %v556
    %817 = vmatprep.subr.mxu0 %v565
    %818 = vmatpush1.msra.mxu0 %v564
    %819 = vmatprep.subr.mxu0 %v573
    %820 = vmatpush1.msra.mxu0 %v572
    %821 = vmatprep.subr.mxu0 %v581
    %822 = vmatpush1.msra.mxu0 %v580
    %823 = vmatprep.subr.mxu0 %v589
    %824 = vmatpush1.msra.mxu0 %v588
    %825 = vmatprep.subr.mxu0 %v597
    %826 = vmatpush1.msra.mxu0 %v596
    %827 = vmatprep.subr.mxu0 %v605
    %828 = vmatpush1.msra.mxu0 %v604
    %829 = vmatprep.subr.mxu0 %v613
    %830 = vmatpush1.msra.mxu0 %v612
    %831 = vmatprep.subr.mxu0 %v621
    %832 = vmatpush1.msra.mxu0 %v620
    %833 = vmatprep.subr.mxu0 %v629
    %834 = vmatpush1.msra.mxu0 %v628
    %835 = vmatprep.subr.mxu0 %v637
    %836 = vmatpush1.msra.mxu0 %v636
    %837 = vmatprep.subr.mxu0 %v645
    %838 = vmatpush1.msra.mxu0 %v644
    %839 = vmatprep.subr.mxu0 %v653
    %840 = vmatpush1.msra.mxu0 %v652
    %841 = vmatprep.subr.mxu0 %v661
    %842 = vmatpush1.msra.mxu0 %v660
    %843 = vmatprep.subr.mxu0 %v669
    %844 = vmatpush1.msra.mxu0 %v668
    %845 = vmatprep.subr.mxu0 %v677
    %846 = vmatpush1.msra.mxu0 %v676
    %847 = vmatprep.subr.mxu0 %v685
    %848 = vmatpush1.msra.mxu0 %v684
    %849 = vmatprep.subr.mxu0 %v693
    %850 = vmatpush1.msra.mxu0 %v692
    %851 = vmatprep.subr.mxu0 %v701
    %852 = vmatpush1.msra.mxu0 %v700
    %853 = vmatprep.subr.mxu0 %v709
    %854 = vmatpush1.msra.mxu0 %v708
    %855 = vmatprep.subr.mxu0 %v717
    %856 = vmatpush1.msra.mxu0 %v716
    %857 = vmatprep.mubr.f32.mxu0 %v465
    %858 = vmatmul.mubr.f32.gmra.mrb[0].mxu0 %v464
    %v859 = vpop.f32.mrb[0].mxu0
    %v860 = vadd.f32 0.0, %v859
    %v861 = vpop.f32.mrb[0].mxu0
    %v862 = vadd.f32 0.0, %v861
    %863 = vdwg.mxu0
    %864 = vmatprep.subr.mxu0 %v471
    %865 = vmatpush1.msra.mxu0 %v470
    %866 = vmatprep.subr.mxu0 %v479
    %867 = vmatpush1.msra.mxu0 %v478
    %868 = vmatprep.subr.mxu0 %v487
    %869 = vmatpush1.msra.mxu0 %v486
    %870 = vmatprep.subr.mxu0 %v495
    %871 = vmatpush1.msra.mxu0 %v494
    %872 = vmatprep.subr.mxu0 %v503
    %873 = vmatpush1.msra.mxu0 %v502
    %874 = vmatprep.subr.mxu0 %v511
    %875 = vmatpush1.msra.mxu0 %v510
    %876 = vmatprep.subr.mxu0 %v519
    %877 = vmatpush1.msra.mxu0 %v518
    %878 = vmatprep.subr.mxu0 %v527
    %879 = vmatpush1.msra.mxu0 %v526
    %880 = vmatprep.subr.mxu0 %v535
    %881 = vmatpush1.msra.mxu0 %v534
    %882 = vmatprep.subr.mxu0 %v543
    %883 = vmatpush1.msra.mxu0 %v542
    %884 = vmatprep.subr.mxu0 %v551
    %885 = vmatpush1.msra.mxu0 %v550
    %886 = vmatprep.subr.mxu0 %v559
    %887 = vmatpush1.msra.mxu0 %v558
    %888 = vmatprep.subr.mxu0 %v567
    %889 = vmatpush1.msra.mxu0 %v566
    %890 = vmatprep.subr.mxu0 %v575
    %891 = vmatpush1.msra.mxu0 %v574
    %892 = vmatprep.subr.mxu0 %v583
    %893 = vmatpush1.msra.mxu0 %v582
    %894 = vmatprep.subr.mxu0 %v591
    %895 = vmatpush1.msra.mxu0 %v590
    %896 = vmatprep.subr.mxu0 %v599
    %897 = vmatpush1.msra.mxu0 %v598
    %898 = vmatprep.subr.mxu0 %v607
    %899 = vmatpush1.msra.mxu0 %v606
    %900 = vmatprep.subr.mxu0 %v615
    %901 = vmatpush1.msra.mxu0 %v614
    %902 = vmatprep.subr.mxu0 %v623
    %903 = vmatpush1.msra.mxu0 %v622
    %904 = vmatprep.subr.mxu0 %v631
    %905 = vmatpush1.msra.mxu0 %v630
    %906 = vmatprep.subr.mxu0 %v639
    %907 = vmatpush1.msra.mxu0 %v638
    %908 = vmatprep.subr.mxu0 %v647
    %909 = vmatpush1.msra.mxu0 %v646
    %910 = vmatprep.subr.mxu0 %v655
    %911 = vmatpush1.msra.mxu0 %v654
    %912 = vmatprep.subr.mxu0 %v663
    %913 = vmatpush1.msra.mxu0 %v662
    %914 = vmatprep.subr.mxu0 %v671
    %915 = vmatpush1.msra.mxu0 %v670
    %916 = vmatprep.subr.mxu0 %v679
    %917 = vmatpush1.msra.mxu0 %v678
    %918 = vmatprep.subr.mxu0 %v687
    %919 = vmatpush1.msra.mxu0 %v686
    %920 = vmatprep.subr.mxu0 %v695
    %921 = vmatpush1.msra.mxu0 %v694
    %922 = vmatprep.subr.mxu0 %v703
    %923 = vmatpush1.msra.mxu0 %v702
    %924 = vmatprep.subr.mxu0 %v711
    %925 = vmatpush1.msra.mxu0 %v710
    %926 = vmatprep.subr.mxu0 %v719
    %927 = vmatpush1.msra.mxu0 %v718
    %928 = vmatprep.mubr.f32.mxu0 %v465
    %929 = vmatmul.mubr.f32.gmra.mrb[0].mxu0 %v464
    %v930 = vpop.f32.mrb[0].mxu0
    %v931 = vadd.f32 0.0, %v930
    %v932 = vpop.f32.mrb[0].mxu0
    %v933 = vadd.f32 0.0, %v932
    %934 = vdwg.mxu0
    %935 = vmatprep.subr.mxu0 %v473
    %936 = vmatpush1.msra.mxu0 %v472
    %937 = vmatprep.subr.mxu0 %v481
    %938 = vmatpush1.msra.mxu0 %v480
    %939 = vmatprep.subr.mxu0 %v489
    %940 = vmatpush1.msra.mxu0 %v488
    %941 = vmatprep.subr.mxu0 %v497
    %942 = vmatpush1.msra.mxu0 %v496
    %943 = vmatprep.subr.mxu0 %v505
    %944 = vmatpush1.msra.mxu0 %v504
    %945 = vmatprep.subr.mxu0 %v513
    %946 = vmatpush1.msra.mxu0 %v512
    %947 = vmatprep.subr.mxu0 %v521
    %948 = vmatpush1.msra.mxu0 %v520
    %949 = vmatprep.subr.mxu0 %v529
    %950 = vmatpush1.msra.mxu0 %v528
    %951 = vmatprep.subr.mxu0 %v537
    %952 = vmatpush1.msra.mxu0 %v536
    %953 = vmatprep.subr.mxu0 %v545
    %954 = vmatpush1.msra.mxu0 %v544
    %955 = vmatprep.subr.mxu0 %v553
    %956 = vmatpush1.msra.mxu0 %v552
    %957 = vmatprep.subr.mxu0 %v561
    %958 = vmatpush1.msra.mxu0 %v560
    %959 = vmatprep.subr.mxu0 %v569
    %960 = vmatpush1.msra.mxu0 %v568
    %961 = vmatprep.subr.mxu0 %v577
    %962 = vmatpush1.msra.mxu0 %v576
    %963 = vmatprep.subr.mxu0 %v585
    %964 = vmatpush1.msra.mxu0 %v584
    %965 = vmatprep.subr.mxu0 %v593
    %966 = vmatpush1.msra.mxu0 %v592
    %967 = vmatprep.subr.mxu0 %v601
    %968 = vmatpush1.msra.mxu0 %v600
    %969 = vmatprep.subr.mxu0 %v609
    %970 = vmatpush1.msra.mxu0 %v608
    %971 = vmatprep.subr.mxu0 %v617
    %972 = vmatpush1.msra.mxu0 %v616
    %973 = vmatprep.subr.mxu0 %v625
    %974 = vmatpush1.msra.mxu0 %v624
    %975 = vmatprep.subr.mxu0 %v633
    %976 = vmatpush1.msra.mxu0 %v632
    %977 = vmatprep.subr.mxu0 %v641
    %978 = vmatpush1.msra.mxu0 %v640
    %979 = vmatprep.subr.mxu0 %v649
    %980 = vmatpush1.msra.mxu0 %v648
    %981 = vmatprep.subr.mxu0 %v657
    %982 = vmatpush1.msra.mxu0 %v656
    %983 = vmatprep.subr.mxu0 %v665
    %984 = vmatpush1.msra.mxu0 %v664
    %985 = vmatprep.subr.mxu0 %v673
    %986 = vmatpush1.msra.mxu0 %v672
    %987 = vmatprep.subr.mxu0 %v681
    %988 = vmatpush1.msra.mxu0 %v680
    %989 = vmatprep.subr.mxu0 %v689
    %990 = vmatpush1.msra.mxu0 %v688
    %991 = vmatprep.subr.mxu0 %v697
    %992 = vmatpush1.msra.mxu0 %v696
    %993 = vmatprep.subr.mxu0 %v705
    %994 = vmatpush1.msra.mxu0 %v704
    %995 = vmatprep.subr.mxu0 %v713
    %996 = vmatpush1.msra.mxu0 %v712
    %997 = vmatprep.subr.mxu0 %v721
    %998 = vmatpush1.msra.mxu0 %v720
    %999 = vmatprep.mubr.f32.mxu0 %v465
    %1000 = vmatmul.mubr.f32.gmra.mrb[0].mxu0 %v464
    %v1001 = vpop.f32.mrb[0].mxu0
    %v1002 = vadd.f32 0.0, %v1001
    %v1003 = vpop.f32.mrb[0].mxu0
    %v1004 = vadd.f32 0.0, %v1003
    %1005 = vdwg.mxu0
    %v1006 = vld [vmem:[%s7] sm:$0xff]
    %v1007 = vld [vmem:[%s7 + $0x8] sm:$0xff]
    %v1008 = vld [vmem:[%s7 + $0x10] sm:$0xff]
    %v1009 = vld [vmem:[%s7 + $0x18] sm:$0xff]
    %v1010 = vld [vmem:[%s7 + $0x20] sm:$0xff]
    %v1011 = vld [vmem:[%s7 + $0x28] sm:$0xff]
    %v1012 = vld [vmem:[%s7 + $0x30] sm:$0xff]
    %v1013 = vld [vmem:[%s7 + $0x38] sm:$0xff]
    %v1014 = vld [vmem:[%s7 + $0x40] sm:$0xff]
    %v1015 = vld [vmem:[%s7 + $0x48] sm:$0xff]
    %v1016 = vld [vmem:[%s7 + $0x50] sm:$0xff]
    %v1017 = vld [vmem:[%s7 + $0x58] sm:$0xff]
    %v1018 = vld [vmem:[%s7 + $0x60] sm:$0xff]
    %v1019 = vld [vmem:[%s7 + $0x68] sm:$0xff]
    %v1020 = vld [vmem:[%s7 + $0x70] sm:$0xff]
    %v1021 = vld [vmem:[%s7 + $0x78] sm:$0xff]
    %v1022 = vld [vmem:[%s7 + $0x80] sm:$0xff]
    %v1023 = vld [vmem:[%s7 + $0x88] sm:$0xff]
    %v1024 = vld [vmem:[%s7 + $0x90] sm:$0xff]
    %v1025 = vld [vmem:[%s7 + $0x98] sm:$0xff]
    %v1026 = vld [vmem:[%s7 + $0xa0] sm:$0xff]
    %v1027 = vld [vmem:[%s7 + $0xa8] sm:$0xff]
    %v1028 = vld [vmem:[%s7 + $0xb0] sm:$0xff]
    %v1029 = vld [vmem:[%s7 + $0xb8] sm:$0xff]
    %v1030 = vld [vmem:[%s7 + $0xc0] sm:$0xff]
    %v1031 = vld [vmem:[%s7 + $0xc8] sm:$0xff]
    %v1032 = vld [vmem:[%s7 + $0xd0] sm:$0xff]
    %v1033 = vld [vmem:[%s7 + $0xd8] sm:$0xff]
    %v1034 = vld [vmem:[%s7 + $0xe0] sm:$0xff]
    %v1035 = vld [vmem:[%s7 + $0xe8] sm:$0xff]
    %v1036 = vld [vmem:[%s7 + $0xf0] sm:$0xff]
    %v1037 = vld [vmem:[%s7 + $0xf8] sm:$0xff]
    %v1038 = vld [vmem:[%s7 + $0x100] sm:$0xff]
    %v1039 = vld [vmem:[%s7 + $0x108] sm:$0xff]
    %v1040 = vld [vmem:[%s7 + $0x110] sm:$0xff]
    %v1041 = vld [vmem:[%s7 + $0x118] sm:$0xff]
    %v1042 = vld [vmem:[%s7 + $0x120] sm:$0xff]
    %v1043 = vld [vmem:[%s7 + $0x128] sm:$0xff]
    %v1044 = vld [vmem:[%s7 + $0x130] sm:$0xff]
    %v1045 = vld [vmem:[%s7 + $0x138] sm:$0xff]
    %v1046 = vld [vmem:[%s7 + $0x140] sm:$0xff]
    %v1047 = vld [vmem:[%s7 + $0x148] sm:$0xff]
    %v1048 = vld [vmem:[%s7 + $0x150] sm:$0xff]
    %v1049 = vld [vmem:[%s7 + $0x158] sm:$0xff]
    %v1050 = vld [vmem:[%s7 + $0x160] sm:$0xff]
    %v1051 = vld [vmem:[%s7 + $0x168] sm:$0xff]
    %v1052 = vld [vmem:[%s7 + $0x170] sm:$0xff]
    %v1053 = vld [vmem:[%s7 + $0x178] sm:$0xff]
    %v1054 = vld [vmem:[%s7 + $0x180] sm:$0xff]
    %v1055 = vld [vmem:[%s7 + $0x188] sm:$0xff]
    %v1056 = vld [vmem:[%s7 + $0x190] sm:$0xff]
    %v1057 = vld [vmem:[%s7 + $0x198] sm:$0xff]
    %v1058 = vld [vmem:[%s7 + $0x1a0] sm:$0xff]
    %v1059 = vld [vmem:[%s7 + $0x1a8] sm:$0xff]
    %v1060 = vld [vmem:[%s7 + $0x1b0] sm:$0xff]
    %v1061 = vld [vmem:[%s7 + $0x1b8] sm:$0xff]
    %v1062 = vld [vmem:[%s7 + $0x1c0] sm:$0xff]
    %v1063 = vld [vmem:[%s7 + $0x1c8] sm:$0xff]
    %v1064 = vld [vmem:[%s7 + $0x1d0] sm:$0xff]
    %v1065 = vld [vmem:[%s7 + $0x1d8] sm:$0xff]
    %v1066 = vld [vmem:[%s7 + $0x1e0] sm:$0xff]
    %v1067 = vld [vmem:[%s7 + $0x1e8] sm:$0xff]
    %v1068 = vld [vmem:[%s7 + $0x1f0] sm:$0xff]
    %v1069 = vld [vmem:[%s7 + $0x1f8] sm:$0xff]
    %v1070 = vld [vmem:[%s7 + $0x200] sm:$0xff]
    %v1071 = vld [vmem:[%s7 + $0x208] sm:$0xff]
    %v1072 = vld [vmem:[%s7 + $0x210] sm:$0xff]
    %v1073 = vld [vmem:[%s7 + $0x218] sm:$0xff]
    %v1074 = vld [vmem:[%s7 + $0x220] sm:$0xff]
    %v1075 = vld [vmem:[%s7 + $0x228] sm:$0xff]
    %v1076 = vld [vmem:[%s7 + $0x230] sm:$0xff]
    %v1077 = vld [vmem:[%s7 + $0x238] sm:$0xff]
    %v1078 = vld [vmem:[%s7 + $0x240] sm:$0xff]
    %v1079 = vld [vmem:[%s7 + $0x248] sm:$0xff]
    %v1080 = vld [vmem:[%s7 + $0x250] sm:$0xff]
    %v1081 = vld [vmem:[%s7 + $0x258] sm:$0xff]
    %v1082 = vld [vmem:[%s7 + $0x260] sm:$0xff]
    %v1083 = vld [vmem:[%s7 + $0x268] sm:$0xff]
    %v1084 = vld [vmem:[%s7 + $0x270] sm:$0xff]
    %v1085 = vld [vmem:[%s7 + $0x278] sm:$0xff]
    %v1086 = vld [vmem:[%s7 + $0x280] sm:$0xff]
    %v1087 = vld [vmem:[%s7 + $0x288] sm:$0xff]
    %v1088 = vld [vmem:[%s7 + $0x290] sm:$0xff]
    %v1089 = vld [vmem:[%s7 + $0x298] sm:$0xff]
    %v1090 = vld [vmem:[%s7 + $0x2a0] sm:$0xff]
    %v1091 = vld [vmem:[%s7 + $0x2a8] sm:$0xff]
    %v1092 = vld [vmem:[%s7 + $0x2b0] sm:$0xff]
    %v1093 = vld [vmem:[%s7 + $0x2b8] sm:$0xff]
    %v1094 = vld [vmem:[%s7 + $0x2c0] sm:$0xff]
    %v1095 = vld [vmem:[%s7 + $0x2c8] sm:$0xff]
    %v1096 = vld [vmem:[%s7 + $0x2d0] sm:$0xff]
    %v1097 = vld [vmem:[%s7 + $0x2d8] sm:$0xff]
    %v1098 = vld [vmem:[%s7 + $0x2e0] sm:$0xff]
    %v1099 = vld [vmem:[%s7 + $0x2e8] sm:$0xff]
    %v1100 = vld [vmem:[%s7 + $0x2f0] sm:$0xff]
    %v1101 = vld [vmem:[%s7 + $0x2f8] sm:$0xff]
    %v1102 = vld [vmem:[%s7 + $0x300] sm:$0xff]
    %v1103 = vld [vmem:[%s7 + $0x308] sm:$0xff]
    %v1104 = vld [vmem:[%s7 + $0x310] sm:$0xff]
    %v1105 = vld [vmem:[%s7 + $0x318] sm:$0xff]
    %v1106 = vld [vmem:[%s7 + $0x320] sm:$0xff]
    %v1107 = vld [vmem:[%s7 + $0x328] sm:$0xff]
    %v1108 = vld [vmem:[%s7 + $0x330] sm:$0xff]
    %v1109 = vld [vmem:[%s7 + $0x338] sm:$0xff]
    %v1110 = vld [vmem:[%s7 + $0x340] sm:$0xff]
    %v1111 = vld [vmem:[%s7 + $0x348] sm:$0xff]
    %v1112 = vld [vmem:[%s7 + $0x350] sm:$0xff]
    %v1113 = vld [vmem:[%s7 + $0x358] sm:$0xff]
    %v1114 = vld [vmem:[%s7 + $0x360] sm:$0xff]
    %v1115 = vld [vmem:[%s7 + $0x368] sm:$0xff]
    %v1116 = vld [vmem:[%s7 + $0x370] sm:$0xff]
    %v1117 = vld [vmem:[%s7 + $0x378] sm:$0xff]
    %v1118 = vld [vmem:[%s7 + $0x380] sm:$0xff]
    %v1119 = vld [vmem:[%s7 + $0x388] sm:$0xff]
    %v1120 = vld [vmem:[%s7 + $0x390] sm:$0xff]
    %v1121 = vld [vmem:[%s7 + $0x398] sm:$0xff]
    %v1122 = vld [vmem:[%s7 + $0x3a0] sm:$0xff]
    %v1123 = vld [vmem:[%s7 + $0x3a8] sm:$0xff]
    %v1124 = vld [vmem:[%s7 + $0x3b0] sm:$0xff]
    %v1125 = vld [vmem:[%s7 + $0x3b8] sm:$0xff]
    %v1126 = vld [vmem:[%s7 + $0x3c0] sm:$0xff]
    %v1127 = vld [vmem:[%s7 + $0x3c8] sm:$0xff]
    %v1128 = vld [vmem:[%s7 + $0x3d0] sm:$0xff]
    %v1129 = vld [vmem:[%s7 + $0x3d8] sm:$0xff]
    %v1130 = vld [vmem:[%s7 + $0x3e0] sm:$0xff]
    %v1131 = vld [vmem:[%s7 + $0x3e8] sm:$0xff]
    %v1132 = vld [vmem:[%s7 + $0x3f0] sm:$0xff]
    %v1133 = vld [vmem:[%s7 + $0x3f8] sm:$0xff]
    %1134 = vmatprep.subr.mxu0 0.0
    %1135 = vmatpush1.msra.mxu0 %v1006
    %1136 = vmatprep.subr.mxu0 0.0
    %1137 = vmatpush1.msra.mxu0 %v1007
    %1138 = vmatprep.subr.mxu0 0.0
    %1139 = vmatpush1.msra.mxu0 %v1008
    %1140 = vmatprep.subr.mxu0 0.0
    %1141 = vmatpush1.msra.mxu0 %v1009
    %1142 = vmatprep.subr.mxu0 0.0
    %1143 = vmatpush1.msra.mxu0 %v1010
    %1144 = vmatprep.subr.mxu0 0.0
    %1145 = vmatpush1.msra.mxu0 %v1011
    %1146 = vmatprep.subr.mxu0 0.0
    %1147 = vmatpush1.msra.mxu0 %v1012
    %1148 = vmatprep.subr.mxu0 0.0
    %1149 = vmatpush1.msra.mxu0 %v1013
    %1150 = vmatprep.subr.mxu0 0.0
    %1151 = vmatpush1.msra.mxu0 %v1014
    %1152 = vmatprep.subr.mxu0 0.0
    %1153 = vmatpush1.msra.mxu0 %v1015
    %1154 = vmatprep.subr.mxu0 0.0
    %1155 = vmatpush1.msra.mxu0 %v1016
    %1156 = vmatprep.subr.mxu0 0.0
    %1157 = vmatpush1.msra.mxu0 %v1017
    %1158 = vmatprep.subr.mxu0 0.0
    %1159 = vmatpush1.msra.mxu0 %v1018
    %1160 = vmatprep.subr.mxu0 0.0
    %1161 = vmatpush1.msra.mxu0 %v1019
    %1162 = vmatprep.subr.mxu0 0.0
    %1163 = vmatpush1.msra.mxu0 %v1020
    %1164 = vmatprep.subr.mxu0 0.0
    %1165 = vmatpush1.msra.mxu0 %v1021
    %1166 = vmatprep.subr.mxu0 0.0
    %1167 = vmatpush1.msra.mxu0 %v1022
    %1168 = vmatprep.subr.mxu0 0.0
    %1169 = vmatpush1.msra.mxu0 %v1023
    %1170 = vmatprep.subr.mxu0 0.0
    %1171 = vmatpush1.msra.mxu0 %v1024
    %1172 = vmatprep.subr.mxu0 0.0
    %1173 = vmatpush1.msra.mxu0 %v1025
    %1174 = vmatprep.subr.mxu0 0.0
    %1175 = vmatpush1.msra.mxu0 %v1026
    %1176 = vmatprep.subr.mxu0 0.0
    %1177 = vmatpush1.msra.mxu0 %v1027
    %1178 = vmatprep.subr.mxu0 0.0
    %1179 = vmatpush1.msra.mxu0 %v1028
    %1180 = vmatprep.subr.mxu0 0.0
    %1181 = vmatpush1.msra.mxu0 %v1029
    %1182 = vmatprep.subr.mxu0 0.0
    %1183 = vmatpush1.msra.mxu0 %v1030
    %1184 = vmatprep.subr.mxu0 0.0
    %1185 = vmatpush1.msra.mxu0 %v1031
    %1186 = vmatprep.subr.mxu0 0.0
    %1187 = vmatpush1.msra.mxu0 %v1032
    %1188 = vmatprep.subr.mxu0 0.0
    %1189 = vmatpush1.msra.mxu0 %v1033
    %1190 = vmatprep.subr.mxu0 0.0
    %1191 = vmatpush1.msra.mxu0 %v1034
    %1192 = vmatprep.subr.mxu0 0.0
    %1193 = vmatpush1.msra.mxu0 %v1035
    %1194 = vmatprep.subr.mxu0 0.0
    %1195 = vmatpush1.msra.mxu0 %v1036
    %1196 = vmatprep.subr.mxu0 0.0
    %1197 = vmatpush1.msra.mxu0 %v1037
    %1198 = vmatprep.mubr.f32.mxu0 %v791
    %1199 = vmatmul.mubr.f32.gmra.mrb[0].mxu0 %v789
    %v1200 = vpop.f32.mrb[0].mxu0
    %v1201 = vadd.f32 0.0, %v1200
    %v1202 = vpop.f32.mrb[0].mxu0
    %1203 = vdwg.mxu0
    %1204 = vmatprep.subr.mxu0 0.0
    %1205 = vmatpush1.msra.mxu0 %v1038
    %1206 = vmatprep.subr.mxu0 0.0
    %1207 = vmatpush1.msra.mxu0 %v1039
    %1208 = vmatprep.subr.mxu0 0.0
    %1209 = vmatpush1.msra.mxu0 %v1040
    %1210 = vmatprep.subr.mxu0 0.0
    %1211 = vmatpush1.msra.mxu0 %v1041
    %1212 = vmatprep.subr.mxu0 0.0
    %1213 = vmatpush1.msra.mxu0 %v1042
    %1214 = vmatprep.subr.mxu0 0.0
    %1215 = vmatpush1.msra.mxu0 %v1043
    %1216 = vmatprep.subr.mxu0 0.0
    %1217 = vmatpush1.msra.mxu0 %v1044
    %1218 = vmatprep.subr.mxu0 0.0
    %1219 = vmatpush1.msra.mxu0 %v1045
    %1220 = vmatprep.subr.mxu0 0.0
    %1221 = vmatpush1.msra.mxu0 %v1046
    %1222 = vmatprep.subr.mxu0 0.0
    %1223 = vmatpush1.msra.mxu0 %v1047
    %1224 = vmatprep.subr.mxu0 0.0
    %1225 = vmatpush1.msra.mxu0 %v1048
    %1226 = vmatprep.subr.mxu0 0.0
    %1227 = vmatpush1.msra.mxu0 %v1049
    %1228 = vmatprep.subr.mxu0 0.0
    %1229 = vmatpush1.msra.mxu0 %v1050
    %1230 = vmatprep.subr.mxu0 0.0
    %1231 = vmatpush1.msra.mxu0 %v1051
    %1232 = vmatprep.subr.mxu0 0.0
    %1233 = vmatpush1.msra.mxu0 %v1052
    %1234 = vmatprep.subr.mxu0 0.0
    %1235 = vmatpush1.msra.mxu0 %v1053
    %1236 = vmatprep.subr.mxu0 0.0
    %1237 = vmatpush1.msra.mxu0 %v1054
    %1238 = vmatprep.subr.mxu0 0.0
    %1239 = vmatpush1.msra.mxu0 %v1055
    %1240 = vmatprep.subr.mxu0 0.0
    %1241 = vmatpush1.msra.mxu0 %v1056
    %1242 = vmatprep.subr.mxu0 0.0
    %1243 = vmatpush1.msra.mxu0 %v1057
    %1244 = vmatprep.subr.mxu0 0.0
    %1245 = vmatpush1.msra.mxu0 %v1058
    %1246 = vmatprep.subr.mxu0 0.0
    %1247 = vmatpush1.msra.mxu0 %v1059
    %1248 = vmatprep.subr.mxu0 0.0
    %1249 = vmatpush1.msra.mxu0 %v1060
    %1250 = vmatprep.subr.mxu0 0.0
    %1251 = vmatpush1.msra.mxu0 %v1061
    %1252 = vmatprep.subr.mxu0 0.0
    %1253 = vmatpush1.msra.mxu0 %v1062
    %1254 = vmatprep.subr.mxu0 0.0
    %1255 = vmatpush1.msra.mxu0 %v1063
    %1256 = vmatprep.subr.mxu0 0.0
    %1257 = vmatpush1.msra.mxu0 %v1064
    %1258 = vmatprep.subr.mxu0 0.0
    %1259 = vmatpush1.msra.mxu0 %v1065
    %1260 = vmatprep.subr.mxu0 0.0
    %1261 = vmatpush1.msra.mxu0 %v1066
    %1262 = vmatprep.subr.mxu0 0.0
    %1263 = vmatpush1.msra.mxu0 %v1067
    %1264 = vmatprep.subr.mxu0 0.0
    %1265 = vmatpush1.msra.mxu0 %v1068
    %1266 = vmatprep.subr.mxu0 0.0
    %1267 = vmatpush1.msra.mxu0 %v1069
    %1268 = vmatprep.mubr.f32.mxu0 %v862
    %1269 = vmatmul.mubr.f32.gmra.mrb[0].mxu0 %v860
    %v1270 = vpop.f32.mrb[0].mxu0
    %v1271 = vadd.f32 %v1201, %v1270
    %v1272 = vpop.f32.mrb[0].mxu0
    %1273 = vdwg.mxu0
    %1274 = vmatprep.subr.mxu0 0.0
    %1275 = vmatpush1.msra.mxu0 %v1070
    %1276 = vmatprep.subr.mxu0 0.0
    %1277 = vmatpush1.msra.mxu0 %v1071
    %1278 = vmatprep.subr.mxu0 0.0
    %1279 = vmatpush1.msra.mxu0 %v1072
    %1280 = vmatprep.subr.mxu0 0.0
    %1281 = vmatpush1.msra.mxu0 %v1073
    %1282 = vmatprep.subr.mxu0 0.0
    %1283 = vmatpush1.msra.mxu0 %v1074
    %1284 = vmatprep.subr.mxu0 0.0
    %1285 = vmatpush1.msra.mxu0 %v1075
    %1286 = vmatprep.subr.mxu0 0.0
    %1287 = vmatpush1.msra.mxu0 %v1076
    %1288 = vmatprep.subr.mxu0 0.0
    %1289 = vmatpush1.msra.mxu0 %v1077
    %1290 = vmatprep.subr.mxu0 0.0
    %1291 = vmatpush1.msra.mxu0 %v1078
    %1292 = vmatprep.subr.mxu0 0.0
    %1293 = vmatpush1.msra.mxu0 %v1079
    %1294 = vmatprep.subr.mxu0 0.0
    %1295 = vmatpush1.msra.mxu0 %v1080
    %1296 = vmatprep.subr.mxu0 0.0
    %1297 = vmatpush1.msra.mxu0 %v1081
    %1298 = vmatprep.subr.mxu0 0.0
    %1299 = vmatpush1.msra.mxu0 %v1082
    %1300 = vmatprep.subr.mxu0 0.0
    %1301 = vmatpush1.msra.mxu0 %v1083
    %1302 = vmatprep.subr.mxu0 0.0
    %1303 = vmatpush1.msra.mxu0 %v1084
    %1304 = vmatprep.subr.mxu0 0.0
    %1305 = vmatpush1.msra.mxu0 %v1085
    %1306 = vmatprep.subr.mxu0 0.0
    %1307 = vmatpush1.msra.mxu0 %v1086
    %1308 = vmatprep.subr.mxu0 0.0
    %1309 = vmatpush1.msra.mxu0 %v1087
    %1310 = vmatprep.subr.mxu0 0.0
    %1311 = vmatpush1.msra.mxu0 %v1088
    %1312 = vmatprep.subr.mxu0 0.0
    %1313 = vmatpush1.msra.mxu0 %v1089
    %1314 = vmatprep.subr.mxu0 0.0
    %1315 = vmatpush1.msra.mxu0 %v1090
    %1316 = vmatprep.subr.mxu0 0.0
    %1317 = vmatpush1.msra.mxu0 %v1091
    %1318 = vmatprep.subr.mxu0 0.0
    %1319 = vmatpush1.msra.mxu0 %v1092
    %1320 = vmatprep.subr.mxu0 0.0
    %1321 = vmatpush1.msra.mxu0 %v1093
    %1322 = vmatprep.subr.mxu0 0.0
    %1323 = vmatpush1.msra.mxu0 %v1094
    %1324 = vmatprep.subr.mxu0 0.0
    %1325 = vmatpush1.msra.mxu0 %v1095
    %1326 = vmatprep.subr.mxu0 0.0
    %1327 = vmatpush1.msra.mxu0 %v1096
    %1328 = vmatprep.subr.mxu0 0.0
    %1329 = vmatpush1.msra.mxu0 %v1097
    %1330 = vmatprep.subr.mxu0 0.0
    %1331 = vmatpush1.msra.mxu0 %v1098
    %1332 = vmatprep.subr.mxu0 0.0
    %1333 = vmatpush1.msra.mxu0 %v1099
    %1334 = vmatprep.subr.mxu0 0.0
    %1335 = vmatpush1.msra.mxu0 %v1100
    %1336 = vmatprep.subr.mxu0 0.0
    %1337 = vmatpush1.msra.mxu0 %v1101
    %1338 = vmatprep.mubr.f32.mxu0 %v933
    %1339 = vmatmul.mubr.f32.gmra.mrb[0].mxu0 %v931
    %v1340 = vpop.f32.mrb[0].mxu0
    %v1341 = vadd.f32 %v1271, %v1340
    %v1342 = vpop.f32.mrb[0].mxu0
    %1343 = vdwg.mxu0
    %1344 = vmatprep.subr.mxu0 0.0
    %1345 = vmatpush1.msra.mxu0 %v1102
    %1346 = vmatprep.subr.mxu0 0.0
    %1347 = vmatpush1.msra.mxu0 %v1103
    %1348 = vmatprep.subr.mxu0 0.0
    %1349 = vmatpush1.msra.mxu0 %v1104
    %1350 = vmatprep.subr.mxu0 0.0
    %1351 = vmatpush1.msra.mxu0 %v1105
    %1352 = vmatprep.subr.mxu0 0.0
    %1353 = vmatpush1.msra.mxu0 %v1106
    %1354 = vmatprep.subr.mxu0 0.0
    %1355 = vmatpush1.msra.mxu0 %v1107
    %1356 = vmatprep.subr.mxu0 0.0
    %1357 = vmatpush1.msra.mxu0 %v1108
    %1358 = vmatprep.subr.mxu0 0.0
    %1359 = vmatpush1.msra.mxu0 %v1109
    %1360 = vmatprep.subr.mxu0 0.0
    %1361 = vmatpush1.msra.mxu0 %v1110
    %1362 = vmatprep.subr.mxu0 0.0
    %1363 = vmatpush1.msra.mxu0 %v1111
    %1364 = vmatprep.subr.mxu0 0.0
    %1365 = vmatpush1.msra.mxu0 %v1112
    %1366 = vmatprep.subr.mxu0 0.0
    %1367 = vmatpush1.msra.mxu0 %v1113
    %1368 = vmatprep.subr.mxu0 0.0
    %1369 = vmatpush1.msra.mxu0 %v1114
    %1370 = vmatprep.subr.mxu0 0.0
    %1371 = vmatpush1.msra.mxu0 %v1115
    %1372 = vmatprep.subr.mxu0 0.0
    %1373 = vmatpush1.msra.mxu0 %v1116
    %1374 = vmatprep.subr.mxu0 0.0
    %1375 = vmatpush1.msra.mxu0 %v1117
    %1376 = vmatprep.subr.mxu0 0.0
    %1377 = vmatpush1.msra.mxu0 %v1118
    %1378 = vmatprep.subr.mxu0 0.0
    %1379 = vmatpush1.msra.mxu0 %v1119
    %1380 = vmatprep.subr.mxu0 0.0
    %1381 = vmatpush1.msra.mxu0 %v1120
    %1382 = vmatprep.subr.mxu0 0.0
    %1383 = vmatpush1.msra.mxu0 %v1121
    %1384 = vmatprep.subr.mxu0 0.0
    %1385 = vmatpush1.msra.mxu0 %v1122
    %1386 = vmatprep.subr.mxu0 0.0
    %1387 = vmatpush1.msra.mxu0 %v1123
    %1388 = vmatprep.subr.mxu0 0.0
    %1389 = vmatpush1.msra.mxu0 %v1124
    %1390 = vmatprep.subr.mxu0 0.0
    %1391 = vmatpush1.msra.mxu0 %v1125
    %1392 = vmatprep.subr.mxu0 0.0
    %1393 = vmatpush1.msra.mxu0 %v1126
    %1394 = vmatprep.subr.mxu0 0.0
    %1395 = vmatpush1.msra.mxu0 %v1127
    %1396 = vmatprep.subr.mxu0 0.0
    %1397 = vmatpush1.msra.mxu0 %v1128
    %1398 = vmatprep.subr.mxu0 0.0
    %1399 = vmatpush1.msra.mxu0 %v1129
    %1400 = vmatprep.subr.mxu0 0.0
    %1401 = vmatpush1.msra.mxu0 %v1130
    %1402 = vmatprep.subr.mxu0 0.0
    %1403 = vmatpush1.msra.mxu0 %v1131
    %1404 = vmatprep.subr.mxu0 0.0
    %1405 = vmatpush1.msra.mxu0 %v1132
    %1406 = vmatprep.subr.mxu0 0.0
    %1407 = vmatpush1.msra.mxu0 %v1133
    %1408 = vmatprep.mubr.f32.mxu0 %v1004
    %1409 = vmatmul.mubr.f32.gmra.mrb[0].mxu0 %v1002
    %v1410 = vpop.f32.mrb[0].mxu0
    %v1411 = vadd.f32 %v1341, %v1410
    %v1412 = vpop.f32.mrb[0].mxu0
    %1413 = vdwg.mxu0
    %v1414 = vld [vmem:[%s8] sm:$0xff]
    %vm1415 = vcmask 64512
    %v1417 = vsel %vm1415, %v1411, 0
    %1419 = vmatprep.subr.mxu0 0.0
    %1420 = vmatpush1.msra.mxu0 %v1414
    %1421 = vmatprep.subr.mxu0 0.0
    %1422 = vmatpush1.msra.mxu0 0.0
    %1423 = vmatprep.subr.mxu0 0.0
    %1424 = vmatpush1.msra.mxu0 0.0
    %1425 = vmatprep.subr.mxu0 0.0
    %1426 = vmatpush1.msra.mxu0 0.0
    %1427 = vmatprep.subr.mxu0 0.0
    %1428 = vmatpush1.msra.mxu0 0.0
    %1429 = vmatprep.subr.mxu0 0.0
    %1430 = vmatpush1.msra.mxu0 0.0
    %1431 = vmatprep.subr.mxu0 0.0
    %1432 = vmatpush1.msra.mxu0 0.0
    %1433 = vmatprep.subr.mxu0 0.0
    %1434 = vmatpush1.msra.mxu0 0.0
    %1435 = vmatprep.subr.mxu0 0.0
    %1436 = vmatpush1.msra.mxu0 0.0
    %1437 = vmatprep.subr.mxu0 0.0
    %1438 = vmatpush1.msra.mxu0 0.0
    %1439 = vmatprep.subr.mxu0 0.0
    %1440 = vmatpush1.msra.mxu0 0.0
    %1441 = vmatprep.subr.mxu0 0.0
    %1442 = vmatpush1.msra.mxu0 0.0
    %1443 = vmatprep.subr.mxu0 0.0
    %1444 = vmatpush1.msra.mxu0 0.0
    %1445 = vmatprep.subr.mxu0 0.0
    %1446 = vmatpush1.msra.mxu0 0.0
    %1447 = vmatprep.subr.mxu0 0.0
    %1448 = vmatpush1.msra.mxu0 0.0
    %1449 = vmatprep.subr.mxu0 0.0
    %1450 = vmatpush1.msra.mxu0 0.0
    %1451 = vmatprep.subr.mxu0 0.0
    %1452 = vmatpush1.msra.mxu0 0.0
    %1453 = vmatprep.subr.mxu0 0.0
    %1454 = vmatpush1.msra.mxu0 0.0
    %1455 = vmatprep.subr.mxu0 0.0
    %1456 = vmatpush1.msra.mxu0 0.0
    %1457 = vmatprep.subr.mxu0 0.0
    %1458 = vmatpush1.msra.mxu0 0.0
    %1459 = vmatprep.subr.mxu0 0.0
    %1460 = vmatpush1.msra.mxu0 0.0
    %1461 = vmatprep.subr.mxu0 0.0
    %1462 = vmatpush1.msra.mxu0 0.0
    %1463 = vmatprep.subr.mxu0 0.0
    %1464 = vmatpush1.msra.mxu0 0.0
    %1465 = vmatprep.subr.mxu0 0.0
    %1466 = vmatpush1.msra.mxu0 0.0
    %1467 = vmatprep.subr.mxu0 0.0
    %1468 = vmatpush1.msra.mxu0 0.0
    %1469 = vmatprep.subr.mxu0 0.0
    %1470 = vmatpush1.msra.mxu0 0.0
    %1471 = vmatprep.subr.mxu0 0.0
    %1472 = vmatpush1.msra.mxu0 0.0
    %1473 = vmatprep.subr.mxu0 0.0
    %1474 = vmatpush1.msra.mxu0 0.0
    %1475 = vmatprep.subr.mxu0 0.0
    %1476 = vmatpush1.msra.mxu0 0.0
    %1477 = vmatprep.subr.mxu0 0.0
    %1478 = vmatpush1.msra.mxu0 0.0
    %1479 = vmatprep.subr.mxu0 0.0
    %1480 = vmatpush1.msra.mxu0 0.0
    %1481 = vmatprep.subr.mxu0 0.0
    %1482 = vmatpush1.msra.mxu0 0.0
    %1483 = vmatprep.mubr.f32.mxu0 0.0
    %1484 = vmatmul.mubr.f32.gmra.mrb[0].mxu0 %v1417
    %v1485 = vpop.f32.mrb[0].mxu0
    %v1486 = vadd.f32 %v283, %v1485
    %v1487 = vpop.f32.mrb[0].mxu0
    %1488 = vdwg.mxu0
    %v1489 = vlaneseq
    %v1490 = vshrl.u32 %v1489, 7
    %v1491 = vsub.s32 2, %v1490
    %v1492 = vrot.slane %v356, %v1491
    %v1493 = vsub.f32 %v356, %v1492
    %v1494 = vmul.f32 %v1493, %v1493
    %vm1495 = vcmask 254976
    %v1496 = vsel %vm1495, %v1494, 0.0
    %1497 = vadd.xlane.f32.xlu0 %v1496
    %v1498 = vpop.xlane.xlu0 %1497
    %v1499 = vrsqrt.pop %v1498
    %v1500 = vmul.f32 %v1498, %v1499
    %vm1501 = vcmp.eq.f32.partialorder %v1498, inf
    %v1502 = vsel %vm1501, %v1498, %v1500
    %vm1503 = vcmp.eq.f32.partialorder %v1498, 0.0
    %v1504 = vand.u32 %v1498, 2147483648
    %v1505 = vsel %vm1503, %v1504, %v1502
    %v1506 = vmul.f32 %v356, %v356
    %v1507 = vsel %vm1495, %v1506, 0.0
    %1508 = vadd.xlane.f32.xlu0 %v1507
    %v1509 = vpop.xlane.xlu0 %1508
    %v1510 = vmul.f32 %v1486, %v1486
    %vm1511 = vcmask 261120
    %v1513 = vsel %vm1511, 1.0, 0
    %v1516 = vsel %vm1511, %v1510, 0
    %1518 = vmatprep.subr.mxu0 0.0
    %1519 = vmatpush1.xpose.msra.mxu0 %v1516
    %1520 = vmatprep.subr.mxu0 0.0
    %1521 = vmatpush1.xpose.msra.mxu0 0.0
    %1522 = vmatprep.subr.mxu0 0.0
    %1523 = vmatpush1.xpose.msra.mxu0 0.0
    %1524 = vmatprep.subr.mxu0 0.0
    %1525 = vmatpush1.xpose.msra.mxu0 0.0
    %1526 = vmatprep.subr.mxu0 0.0
    %1527 = vmatpush1.xpose.msra.mxu0 0.0
    %1528 = vmatprep.subr.mxu0 0.0
    %1529 = vmatpush1.xpose.msra.mxu0 0.0
    %1530 = vmatprep.subr.mxu0 0.0
    %1531 = vmatpush1.xpose.msra.mxu0 0.0
    %1532 = vmatprep.subr.mxu0 0.0
    %1533 = vmatpush1.xpose.msra.mxu0 0.0
    %1534 = vmatprep.subr.mxu0 0.0
    %1535 = vmatpush1.xpose.msra.mxu0 0.0
    %1536 = vmatprep.subr.mxu0 0.0
    %1537 = vmatpush1.xpose.msra.mxu0 0.0
    %1538 = vmatprep.subr.mxu0 0.0
    %1539 = vmatpush1.xpose.msra.mxu0 0.0
    %1540 = vmatprep.subr.mxu0 0.0
    %1541 = vmatpush1.xpose.msra.mxu0 0.0
    %1542 = vmatprep.subr.mxu0 0.0
    %1543 = vmatpush1.xpose.msra.mxu0 0.0
    %1544 = vmatprep.subr.mxu0 0.0
    %1545 = vmatpush1.xpose.msra.mxu0 0.0
    %1546 = vmatprep.subr.mxu0 0.0
    %1547 = vmatpush1.xpose.msra.mxu0 0.0
    %1548 = vmatprep.subr.mxu0 0.0
    %1549 = vmatpush1.xpose.msra.mxu0 0.0
    %1550 = vmatprep.subr.mxu0 0.0
    %1551 = vmatpush1.xpose.msra.mxu0 0.0
    %1552 = vmatprep.subr.mxu0 0.0
    %1553 = vmatpush1.xpose.msra.mxu0 0.0
    %1554 = vmatprep.subr.mxu0 0.0
    %1555 = vmatpush1.xpose.msra.mxu0 0.0
    %1556 = vmatprep.subr.mxu0 0.0
    %1557 = vmatpush1.xpose.msra.mxu0 0.0
    %1558 = vmatprep.subr.mxu0 0.0
    %1559 = vmatpush1.xpose.msra.mxu0 0.0
    %1560 = vmatprep.subr.mxu0 0.0
    %1561 = vmatpush1.xpose.msra.mxu0 0.0
    %1562 = vmatprep.subr.mxu0 0.0
    %1563 = vmatpush1.xpose.msra.mxu0 0.0
    %1564 = vmatprep.subr.mxu0 0.0
    %1565 = vmatpush1.xpose.msra.mxu0 0.0
    %1566 = vmatprep.subr.mxu0 0.0
    %1567 = vmatpush1.xpose.msra.mxu0 0.0
    %1568 = vmatprep.subr.mxu0 0.0
    %1569 = vmatpush1.xpose.msra.mxu0 0.0
    %1570 = vmatprep.subr.mxu0 0.0
    %1571 = vmatpush1.xpose.msra.mxu0 0.0
    %1572 = vmatprep.subr.mxu0 0.0
    %1573 = vmatpush1.xpose.msra.mxu0 0.0
    %1574 = vmatprep.subr.mxu0 0.0
    %1575 = vmatpush1.xpose.msra.mxu0 0.0
    %1576 = vmatprep.subr.mxu0 0.0
    %1577 = vmatpush1.xpose.msra.mxu0 0.0
    %1578 = vmatprep.subr.mxu0 0.0
    %1579 = vmatpush1.xpose.msra.mxu0 0.0
    %1580 = vmatprep.subr.mxu0 0.0
    %1581 = vmatpush1.xpose.msra.mxu0 0.0
    %1582 = vmatprep.mubr.f32.mxu0 0.0
    %1583 = vmatmul.mubr.f32.gmra.mrb[0].mxu0 %v1513
    %v1584 = vpop.f32.mrb[0].mxu0
    %v1585 = vadd.f32 0.0, %v1584
    %v1586 = vpop.f32.mrb[0].mxu0
    %1587 = vdwg.mxu0
    %v1589 = vsel %vm1511, %v356, 0
    %v1592 = vsel %vm1511, %v1486, 0
    %1594 = vmatprep.subr.mxu0 0.0
    %1595 = vmatpush1.xpose.msra.mxu0 %v1592
    %1596 = vmatprep.subr.mxu0 0.0
    %1597 = vmatpush1.xpose.msra.mxu0 0.0
    %1598 = vmatprep.subr.mxu0 0.0
    %1599 = vmatpush1.xpose.msra.mxu0 0.0
    %1600 = vmatprep.subr.mxu0 0.0
    %1601 = vmatpush1.xpose.msra.mxu0 0.0
    %1602 = vmatprep.subr.mxu0 0.0
    %1603 = vmatpush1.xpose.msra.mxu0 0.0
    %1604 = vmatprep.subr.mxu0 0.0
    %1605 = vmatpush1.xpose.msra.mxu0 0.0
    %1606 = vmatprep.subr.mxu0 0.0
    %1607 = vmatpush1.xpose.msra.mxu0 0.0
    %1608 = vmatprep.subr.mxu0 0.0
    %1609 = vmatpush1.xpose.msra.mxu0 0.0
    %1610 = vmatprep.subr.mxu0 0.0
    %1611 = vmatpush1.xpose.msra.mxu0 0.0
    %1612 = vmatprep.subr.mxu0 0.0
    %1613 = vmatpush1.xpose.msra.mxu0 0.0
    %1614 = vmatprep.subr.mxu0 0.0
    %1615 = vmatpush1.xpose.msra.mxu0 0.0
    %1616 = vmatprep.subr.mxu0 0.0
    %1617 = vmatpush1.xpose.msra.mxu0 0.0
    %1618 = vmatprep.subr.mxu0 0.0
    %1619 = vmatpush1.xpose.msra.mxu0 0.0
    %1620 = vmatprep.subr.mxu0 0.0
    %1621 = vmatpush1.xpose.msra.mxu0 0.0
    %1622 = vmatprep.subr.mxu0 0.0
    %1623 = vmatpush1.xpose.msra.mxu0 0.0
    %1624 = vmatprep.subr.mxu0 0.0
    %1625 = vmatpush1.xpose.msra.mxu0 0.0
    %1626 = vmatprep.subr.mxu0 0.0
    %1627 = vmatpush1.xpose.msra.mxu0 0.0
    %1628 = vmatprep.subr.mxu0 0.0
    %1629 = vmatpush1.xpose.msra.mxu0 0.0
    %1630 = vmatprep.subr.mxu0 0.0
    %1631 = vmatpush1.xpose.msra.mxu0 0.0
    %1632 = vmatprep.subr.mxu0 0.0
    %1633 = vmatpush1.xpose.msra.mxu0 0.0
    %1634 = vmatprep.subr.mxu0 0.0
    %1635 = vmatpush1.xpose.msra.mxu0 0.0
    %1636 = vmatprep.subr.mxu0 0.0
    %1637 = vmatpush1.xpose.msra.mxu0 0.0
    %1638 = vmatprep.subr.mxu0 0.0
    %1639 = vmatpush1.xpose.msra.mxu0 0.0
    %1640 = vmatprep.subr.mxu0 0.0
    %1641 = vmatpush1.xpose.msra.mxu0 0.0
    %1642 = vmatprep.subr.mxu0 0.0
    %1643 = vmatpush1.xpose.msra.mxu0 0.0
    %1644 = vmatprep.subr.mxu0 0.0
    %1645 = vmatpush1.xpose.msra.mxu0 0.0
    %1646 = vmatprep.subr.mxu0 0.0
    %1647 = vmatpush1.xpose.msra.mxu0 0.0
    %1648 = vmatprep.subr.mxu0 0.0
    %1649 = vmatpush1.xpose.msra.mxu0 0.0
    %1650 = vmatprep.subr.mxu0 0.0
    %1651 = vmatpush1.xpose.msra.mxu0 0.0
    %1652 = vmatprep.subr.mxu0 0.0
    %1653 = vmatpush1.xpose.msra.mxu0 0.0
    %1654 = vmatprep.subr.mxu0 0.0
    %1655 = vmatpush1.xpose.msra.mxu0 0.0
    %1656 = vmatprep.subr.mxu0 0.0
    %1657 = vmatpush1.xpose.msra.mxu0 0.0
    %1658 = vmatprep.mubr.f32.mxu0 0.0
    %1659 = vmatmul.mubr.f32.gmra.mrb[0].mxu0 %v1589
    %v1660 = vpop.f32.mrb[0].mxu0
    %v1661 = vadd.f32 0.0, %v1660
    %v1662 = vpop.f32.mrb[0].mxu0
    %1663 = vdwg.mxu0
    %v1664 = vlaneseq
    %v1665 = vshrl.u32 %v1664, 7
    %v1666 = vsub.s32 0, %v1665
    %v1667 = vrot.slane %v1585, %v1666
    %v1668 = vadd.f32 %v1509, %v1667
    %v1669 = vmul.f32 %v1661, 2.0
    %v1670 = vsub.f32 %v1668, %v1669
    %v1671 = vmax.f32 %v1670, 0.0
    %v1672 = vrsqrt.pop %v1671
    %v1673 = vmul.f32 %v1671, %v1672
    %vm1674 = vcmp.eq.f32.partialorder %v1671, inf
    %v1675 = vsel %vm1674, %v1671, %v1673
    %vm1676 = vcmp.eq.f32.partialorder %v1671, 0.0
    %v1677 = vand.u32 %v1671, 2147483648
    %v1678 = vsel %vm1676, %v1677, %v1675
    %v1679 = vsub.f32 %v1678, %v1505
    %v1680 = vmax.f32 %v1679, 0.0
    %vm1681 = vcmask 58368
    %v1682 = vsel %vm1681, %v1680, inf
    %1683 = vmin.xlane.f32.xlu0 %v1682
    %v1684 = vpop.xlane.xlu0 %1683
    %v1685 = vrot.slane %v1684, 4
    %v1686 = vmin.f32 %v1684, %v1685
    %v1687 = vrot.slane %v1686, 2
    %v1688 = vmin.f32 %v1686, %v1687
    %v1689 = vrot.slane %v1688, 1
    %v1690 = vmin.f32 %v1688, %v1689
    %s1691 = vtos %v1690
    %v1692 = vsel %vm1681, %v1680, -inf
    %1693 = vmax.xlane.f32.xlu0 %v1692
    %v1694 = vpop.xlane.xlu0 %1693
    %v1695 = vrot.slane %v1694, 4
    %v1696 = vmax.f32 %v1694, %v1695
    %v1697 = vrot.slane %v1696, 2
    %v1698 = vmax.f32 %v1696, %v1697
    %v1699 = vrot.slane %v1698, 1
    %v1700 = vmax.f32 %v1698, %v1699
    %s1701 = vtos %v1700
    %v1702 = vstv %s1691
    %v1703 = vsub.f32 %v1680, %v1702
    %p1704 = scmp.gt.f32.partialorder %s1701, %s1691
    %s1705 = ssub.f32 %s1701, %s1691
    %s1706 = scalar_select %p1704, %s1705, 1.0
    %v1707 = vstv %s1706
    %v1708 = vrcp.pop %v1707
    %s1709 = vtos %v1708
    %v1710 = vstv %s1709
    %v1711 = vmul.f32 %v1703, %v1710
    %v1712 = vmul.f32 %v1711, 0.125
    %v1714 = vsel %vm1415, %v1712, 0
    %1716 = vmatprep.subr.mxu0 %v447
    %1717 = vmatpush1.msra.mxu0 %v445
    %1718 = vmatprep.subr.mxu0 0.0
    %1719 = vmatpush1.msra.mxu0 0.0
    %1720 = vmatprep.subr.mxu0 0.0
    %1721 = vmatpush1.msra.mxu0 0.0
    %1722 = vmatprep.subr.mxu0 0.0
    %1723 = vmatpush1.msra.mxu0 0.0
    %1724 = vmatprep.subr.mxu0 0.0
    %1725 = vmatpush1.msra.mxu0 0.0
    %1726 = vmatprep.subr.mxu0 0.0
    %1727 = vmatpush1.msra.mxu0 0.0
    %1728 = vmatprep.subr.mxu0 0.0
    %1729 = vmatpush1.msra.mxu0 0.0
    %1730 = vmatprep.subr.mxu0 0.0
    %1731 = vmatpush1.msra.mxu0 0.0
    %1732 = vmatprep.subr.mxu0 0.0
    %1733 = vmatpush1.msra.mxu0 0.0
    %1734 = vmatprep.subr.mxu0 0.0
    %1735 = vmatpush1.msra.mxu0 0.0
    %1736 = vmatprep.subr.mxu0 0.0
    %1737 = vmatpush1.msra.mxu0 0.0
    %1738 = vmatprep.subr.mxu0 0.0
    %1739 = vmatpush1.msra.mxu0 0.0
    %1740 = vmatprep.subr.mxu0 0.0
    %1741 = vmatpush1.msra.mxu0 0.0
    %1742 = vmatprep.subr.mxu0 0.0
    %1743 = vmatpush1.msra.mxu0 0.0
    %1744 = vmatprep.subr.mxu0 0.0
    %1745 = vmatpush1.msra.mxu0 0.0
    %1746 = vmatprep.subr.mxu0 0.0
    %1747 = vmatpush1.msra.mxu0 0.0
    %1748 = vmatprep.subr.mxu0 0.0
    %1749 = vmatpush1.msra.mxu0 0.0
    %1750 = vmatprep.subr.mxu0 0.0
    %1751 = vmatpush1.msra.mxu0 0.0
    %1752 = vmatprep.subr.mxu0 0.0
    %1753 = vmatpush1.msra.mxu0 0.0
    %1754 = vmatprep.subr.mxu0 0.0
    %1755 = vmatpush1.msra.mxu0 0.0
    %1756 = vmatprep.subr.mxu0 0.0
    %1757 = vmatpush1.msra.mxu0 0.0
    %1758 = vmatprep.subr.mxu0 0.0
    %1759 = vmatpush1.msra.mxu0 0.0
    %1760 = vmatprep.subr.mxu0 0.0
    %1761 = vmatpush1.msra.mxu0 0.0
    %1762 = vmatprep.subr.mxu0 0.0
    %1763 = vmatpush1.msra.mxu0 0.0
    %1764 = vmatprep.subr.mxu0 0.0
    %1765 = vmatpush1.msra.mxu0 0.0
    %1766 = vmatprep.subr.mxu0 0.0
    %1767 = vmatpush1.msra.mxu0 0.0
    %1768 = vmatprep.subr.mxu0 0.0
    %1769 = vmatpush1.msra.mxu0 0.0
    %1770 = vmatprep.subr.mxu0 0.0
    %1771 = vmatpush1.msra.mxu0 0.0
    %1772 = vmatprep.subr.mxu0 0.0
    %1773 = vmatpush1.msra.mxu0 0.0
    %1774 = vmatprep.subr.mxu0 0.0
    %1775 = vmatpush1.msra.mxu0 0.0
    %1776 = vmatprep.subr.mxu0 0.0
    %1777 = vmatpush1.msra.mxu0 0.0
    %1778 = vmatprep.subr.mxu0 0.0
    %1779 = vmatpush1.msra.mxu0 0.0
    %1780 = vmatprep.mubr.f32.mxu0 0.0
    %1781 = vmatmul.mubr.f32.gmra.mrb[0].mxu0 %v1714
    %v1782 = vpop.f32.mrb[0].mxu0
    %v1783 = vadd.f32 0.0, %v1782
    %v1784 = vpop.f32.mrb[0].mxu0
    %v1785 = vadd.f32 0.0, %v1784
    %1786 = vdwg.mxu0
    %v1789 = vcombine.low %v1783, %v1785
    %v1791 = vunpack.c.l.s4 1983009808
    %v1792 = vunpack.c.0.s8 %v1791
    %v1793 = vlaneseq
    %v1794 = vshrl.u32 %v1793, 7
    %v1795 = vsub.s32 %v1792, %v1794
    %v1796 = vrot.slane %v1789, %v1795
    %1798 = vst [vmem:[#allocation5] sm:$0xf] %v1796
    // Predicated region
    $region46: #{tpu_custom_call.1} parent=1 // pred_check
      _
    $region47: #{tpu_custom_call.1} parent=1 // pred_check_branch
      %1800 = sbr.rel (0) target = $region49
    $region48: #{tpu_custom_call.1} parent=1 // pred_region
      %s1802 = ssub.s32 64, 64
      %1803 = vsyncadd [#allocation4], %s1802
      %s1805 = sshll.u32 [#allocation5], 4
      %s1806 = int_to_ptr.vmem [resolvable:$true] %s1805
      %1808 = dma.vmem_to_hbm [thread:$0]  %s1806, 64, %s10, [#allocation4]
    $region49: #{tpu_custom_call.1} parent=1 // pred_fallthru
      _
    // Predicated region
    $region50: #{tpu_custom_call.1} parent=1 // pred_check
      _
    $region51: #{tpu_custom_call.1} parent=1 // pred_check_branch
      %1810 = sbr.rel (0) target = $region53
    $region52: #{tpu_custom_call.1} parent=1 // pred_region
      %1811 = dma.done [#allocation4], 64
    $region53: #{tpu_custom_call.1} parent=1 // pred_fallthru
      _
    %1812 = vsyncpa [#allocation3], 1
    %1813 = vsyncpa [#allocation4], 1

</llo_original>
